<compile_context>
chip_gen: v7x
topology: tpu7x:2x2x1
jax: 0.10.0
libtpu: 0.0.40
codegen_flags: <defaults>
</compile_context>

<pallas_src>
import functools

import jax
import jax.numpy as jnp
from jax.experimental import pallas as pl
from jax.experimental.pallas import tpu as pltpu


# ---------------------------------------------------------------------------
# Fused kernel: one batch image per grid step, expanded tensor stays in VMEM.
# ---------------------------------------------------------------------------

def _fused_block_kernel(*refs, H, W, Ho, Wo, stride, has_expand, has_residual):
    i = 0
    x_ref = refs[i]; i += 1
    if has_expand:
        w_exp_ref, b_exp_ref = refs[i], refs[i + 1]; i += 2
    w_dw_ref, b_dw_ref = refs[i], refs[i + 1]; i += 2
    w_proj_ref, b_proj_ref = refs[i], refs[i + 1]; i += 2
    o_ref = refs[i]; i += 1
    pad_ref = refs[i]                       # VMEM scratch: (H+2, W+2, E) f32

    x = x_ref[0].astype(jnp.float32)        # (H, W, Cin)
    cin = x.shape[-1]

    # ---- 1x1 expand conv (BN scale folded into weights) + bias + ReLU6 (MXU) ----
    if has_expand:
        x2d = x.reshape(H * W, cin)
        e = jnp.dot(x2d.astype(w_exp_ref.dtype), w_exp_ref[...],
                    preferred_element_type=jnp.float32)
        e = jnp.clip(e + b_exp_ref[...], 0.0, 6.0)
        e = e.reshape(H, W, e.shape[-1])
    else:
        e = x

    # ---- zero halo handled in-kernel: zero the padded scratch, write interior ----
    pad_ref[...] = jnp.zeros_like(pad_ref)
    pad_ref[1:H + 1, 1:W + 1, :] = e

    # ---- 3x3 depthwise conv (BN scale folded); stride-2 computed directly ----
    w_dw = w_dw_ref[...].astype(jnp.float32)            # (3, 3, E)
    E = w_dw.shape[-1]
    acc = jnp.zeros((Ho, Wo, E), jnp.float32)
    for kh in range(3):                                 # static 3x3 taps, unrolled
        for kw in range(3):
            if stride == 1:
                tap = pad_ref[kh:kh + Ho, kw:kw + Wo, :]
            else:
                tap = pad_ref[pl.ds(kh, Ho, stride=stride),
                              pl.ds(kw, Wo, stride=stride), :]
            acc = acc + tap * w_dw[kh, kw, :]
    h = jnp.clip(acc + b_dw_ref[...], 0.0, 6.0)

    # ---- 1x1 project conv (BN scale folded) + bias (+ residual) (MXU) ----
    h2d = h.reshape(Ho * Wo, E)
    y = jnp.dot(h2d.astype(w_proj_ref.dtype), w_proj_ref[...],
                preferred_element_type=jnp.float32)
    cout = y.shape[-1]
    y = (y + b_proj_ref[...]).reshape(Ho, Wo, cout)
    if has_residual:
        y = y + x
    o_ref[0] = y.astype(o_ref.dtype)


def _inverted_residual_pallas(x_nhwc, params, *, stride, has_expand, has_residual):
    N, H, W, Cin = x_nhwc.shape
    E = params["w_dw"].shape[-1]
    Cout = params["w_proj"].shape[-1]
    Ho = (H - 1) // stride + 1      # k=3, pad=1
    Wo = (W - 1) // stride + 1

    args = [x_nhwc]
    in_specs = [pl.BlockSpec((1, H, W, Cin), lambda n: (n, 0, 0, 0))]

    def _full(arr):                 # whole (small) weight array per grid step
        in_specs.append(pl.BlockSpec(arr.shape, lambda n, _r=arr.ndim: (0,) * _r))
        args.append(arr)

    if has_expand:
        _full(params["w_exp"]); _full(params["b_exp"])
    _full(params["w_dw"]); _full(params["b_dw"])
    _full(params["w_proj"]); _full(params["b_proj"])

    kernel = functools.partial(
        _fused_block_kernel, H=H, W=W, Ho=Ho, Wo=Wo, stride=stride,
        has_expand=has_expand, has_residual=has_residual)

    return pl.pallas_call(
        kernel,
        out_shape=jax.ShapeDtypeStruct((N, Ho, Wo, Cout), x_nhwc.dtype),
        grid=(N,),
        in_specs=in_specs,
        out_specs=pl.BlockSpec((1, Ho, Wo, Cout), lambda n: (n, 0, 0, 0)),
        scratch_shapes=[pltpu.VMEM((H + 2, W + 2, E), jnp.float32)],
        compiler_params=pltpu.CompilerParams(dimension_semantics=("parallel",)),
    )(*args)


# ---------------------------------------------------------------------------
# Module
# ---------------------------------------------------------------------------

def _fold_bn(gamma, beta, mean, var, eps=1e-5):
    scale = gamma / jnp.sqrt(var + eps)
    bias = beta - mean * scale
    return scale, bias


class InvertedResidualPallas:
    """Pallas port of the PyTorch InvertedResidual block (eval-mode BN, folded)."""

    def __init__(self, inp, outp, stride, expand_ratio, key, dtype=jnp.float32):
        assert stride in [1, 2]
        self.inp, self.outp = inp, outp
        self.stride = stride
        self.expand_ratio = expand_ratio
        self.expand_inp = inp * expand_ratio
        self.residual_connection = (stride == 1) and (inp == outp)
        self.dtype = dtype

        keys = jax.random.split(key, 12)
        f32 = jnp.float32
        E = self.expand_inp

        if expand_ratio != 1:
            # USConv2d(inp, E, 1) weight (E, inp, 1, 1) -> (inp, E); BN scale folded in.
            w = 0.1 * jax.random.normal(keys[0], (inp, E), f32)
            g = 1.0 + 0.1 * jax.random.normal(keys[1], (E,), f32)
            b = 0.05 * jax.random.normal(keys[2], (E,), f32)
            m = 0.05 * jax.random.normal(keys[3], (E,), f32)
            v = 1.0 + 0.1 * jax.random.uniform(keys[4], (E,), f32)
            s, bias = _fold_bn(g, b, m, v)
            self.w_exp = (w * s[None, :]).astype(dtype)
            self.b_exp = bias.reshape(1, E).astype(f32)

        # depthwise USConv2d weight (E, 1, 3, 3) -> (3, 3, E); BN scale folded in.
        w = 0.2 * jax.random.normal(keys[5], (3, 3, E), f32)
        g = 1.0 + 0.1 * jax.random.normal(keys[6], (E,), f32)
        b = 0.05 * jax.random.normal(keys[7], (E,), f32)
        m = 0.05 * jax.random.normal(keys[8], (E,), f32)
        v = 1.0 + 0.1 * jax.random.uniform(keys[9], (E,), f32)
        s, bias = _fold_bn(g, b, m, v)
        self.w_dw = (w * s[None, None, :]).astype(dtype)
        self.b_dw = bias.reshape(1, E).astype(f32)

        # project USConv2d weight (outp, E, 1, 1) -> (E, outp); BN scale folded in.
        w = 0.1 * jax.random.normal(keys[10], (E, outp), f32)
        g = 1.0 + 0.1 * jax.random.normal(keys[11], (outp,), f32)
        s, bias = _fold_bn(g, jnp.zeros((outp,), f32), jnp.zeros((outp,), f32),
                           jnp.ones((outp,), f32))
        self.w_proj = (w * s[None, :]).astype(dtype)
        self.b_proj = bias.reshape(1, outp).astype(f32)

    def _params(self):
        p = {"w_dw": self.w_dw, "b_dw": self.b_dw,
             "w_proj": self.w_proj, "b_proj": self.b_proj}
        if self.expand_ratio != 1:
            p["w_exp"] = self.w_exp
            p["b_exp"] = self.b_exp
        return p

    # NHWC fast path: use inside a fully-NHWC model so transposes happen once at
    # model entry/exit instead of per block.
    def forward_nhwc(self, x_nhwc):
        return _inverted_residual_pallas(
            x_nhwc.astype(self.dtype), self._params(), stride=self.stride,
            has_expand=(self.expand_ratio != 1),
            has_residual=self.residual_connection)

    # PyTorch-compatible NCHW interface.
    def __call__(self, x_nchw):
        x = jnp.transpose(x_nchw, (0, 2, 3, 1))      # NCHW -> NHWC
        y = self.forward_nhwc(x)
        return jnp.transpose(y, (0, 3, 1, 2))        # NHWC -> NCHW


# ---------------------------------------------------------------------------
# Demo + correctness check against a pure-JAX reference of the same folded math
# ---------------------------------------------------------------------------

if __name__ == "__main__":
    key = jax.random.PRNGKey(0)
    k_x, k_params = jax.random.split(key)

    inp, outp, stride, expand_ratio = 8, 8, 1, 6          # residual path active
    x = jax.random.normal(k_x, (2, inp, 16, 16), jnp.float32)   # NCHW like PyTorch

    block = InvertedResidualPallas(inp, outp, stride, expand_ratio, k_params)
    y = jax.block_until_ready(jax.jit(block.__call__)(x))
    assert y.shape == (2, outp, 16, 16), y.shape

    def reference(x_nchw):
        xs = jnp.transpose(x_nchw, (0, 2, 3, 1)).astype(jnp.float32)
        h = xs
        if expand_ratio != 1:
            h = jnp.clip(jnp.einsum("nhwc,ce->nhwe", h, block.w_exp.astype(jnp.float32))
                         + block.b_exp[0], 0.0, 6.0)
        hp = jnp.pad(h, ((0, 0), (1, 1), (1, 1), (0, 0)))
        H, W = xs.shape[1], xs.shape[2]
        Ho, Wo = (H - 1) // stride + 1, (W - 1) // stride + 1
        acc = jnp.zeros((xs.shape[0], Ho, Wo, h.shape[-1]), jnp.float32)
        for kh in range(3):
            for kw in range(3):
                acc = acc + hp[:, kh:kh + (Ho - 1) * stride + 1:stride,
                               kw:kw + (Wo - 1) * stride + 1:stride, :] \
                            * block.w_dw.astype(jnp.float32)[kh, kw]
        h = jnp.clip(acc + block.b_dw[0], 0.0, 6.0)
        yr = jnp.einsum("nhwe,eo->nhwo", h, block.w_proj.astype(jnp.float32)) + block.b_proj[0]
        if block.residual_connection:
            yr = yr + xs
        return jnp.transpose(yr, (0, 3, 1, 2))

    y_ref = reference(x)
    err = float(jnp.max(jnp.abs(y - y_ref)))
    scale = float(jnp.max(jnp.abs(y_ref))) + 1e-6
    assert err <= 5e-2 * scale + 1e-3, (err, scale)

    # bf16-at-rest variant (halves HBM traffic in this memory-bound block); smoke test.
    block_bf16 = InvertedResidualPallas(inp, outp, stride, expand_ratio, k_params,
                                        dtype=jnp.bfloat16)
    y16 = jax.block_until_ready(block_bf16(x.astype(jnp.bfloat16)))
    assert y16.shape == (2, outp, 16, 16)
    assert bool(jnp.all(jnp.isfinite(y16.astype(jnp.float32))))

    print("KERNEL_OK")
</pallas_src>

<mosaic_0001>
module attributes {stable_mosaic.version = 11 : i64} {
  func.func @_fused_block_kernel(%arg0: i32, %arg1: memref<1x16x16x8xf32, #tpu.memory_space<vmem>>, %arg2: memref<8x48xf32, #tpu.memory_space<vmem>>, %arg3: memref<1x48xf32, #tpu.memory_space<vmem>>, %arg4: memref<3x3x48xf32, #tpu.memory_space<vmem>>, %arg5: memref<1x48xf32, #tpu.memory_space<vmem>>, %arg6: memref<48x8xf32, #tpu.memory_space<vmem>>, %arg7: memref<1x8xf32, #tpu.memory_space<vmem>>, %arg8: memref<1x16x16x8xf32, #tpu.memory_space<vmem>>, %arg9: memref<18x18x48xf32, #tpu.memory_space<vmem>>) attributes {dimension_semantics = [#tpu.dimension_semantics<parallel>], iteration_bounds = array<i64: 2>, scalar_prefetch = 0 : i64, scratch_operands = 1 : i64, tpu.core_type = #tpu.core_type<tc>, window_params = [{transform_indices = @transform_0, window_bounds = array<i64: 1, 16, 16, 8>}, {pipeline_mode = #tpu.pipeline_mode<synchronous>, transform_indices = @transform_1, window_bounds = array<i64: 8, 48>}, {pipeline_mode = #tpu.pipeline_mode<synchronous>, transform_indices = @transform_2, window_bounds = array<i64: 1, 48>}, {pipeline_mode = #tpu.pipeline_mode<synchronous>, transform_indices = @transform_3, window_bounds = array<i64: 3, 3, 48>}, {pipeline_mode = #tpu.pipeline_mode<synchronous>, transform_indices = @transform_4, window_bounds = array<i64: 1, 48>}, {pipeline_mode = #tpu.pipeline_mode<synchronous>, transform_indices = @transform_5, window_bounds = array<i64: 48, 8>}, {pipeline_mode = #tpu.pipeline_mode<synchronous>, transform_indices = @transform_6, window_bounds = array<i64: 1, 8>}, {transform_indices = @transform_7, window_bounds = array<i64: 1, 16, 16, 8>}]} {
    %c0 = arith.constant 0 : index
    %c0_0 = arith.constant 0 : index
    %c0_1 = arith.constant 0 : index
    %c0_2 = arith.constant 0 : index
    %0 = vector.load %arg1[%c0, %c0_0, %c0_1, %c0_2] : memref<1x16x16x8xf32, #tpu.memory_space<vmem>>, vector<1x16x16x8xf32>
    %1 = vector.shape_cast %0 : vector<1x16x16x8xf32> to vector<16x16x8xf32>
    %2 = vector.shape_cast %1 : vector<16x16x8xf32> to vector<256x8xf32>
    %c0_3 = arith.constant 0 : index
    %c0_4 = arith.constant 0 : index
    %3 = vector.load %arg2[%c0_3, %c0_4] : memref<8x48xf32, #tpu.memory_space<vmem>>, vector<8x48xf32>
    %cst = arith.constant dense<0.000000e+00> : vector<256x48xf32>
    %4 = tpu.matmul %2, %3, %cst {dimension_numbers = #tpu.dot_dimension_numbers<[1], [0], [0], [1], [0, 0, 1, 1], [], []>} : vector<256x8xf32>, vector<8x48xf32>, vector<256x48xf32> -> vector<256x48xf32>
    %c0_5 = arith.constant 0 : index
    %c0_6 = arith.constant 0 : index
    %5 = vector.load %arg3[%c0_5, %c0_6] : memref<1x48xf32, #tpu.memory_space<vmem>>, vector<1x48xf32>
    %6 = vector.broadcast %5 : vector<1x48xf32> to vector<256x48xf32>
    %7 = arith.addf %4, %6 : vector<256x48xf32>
    %cst_7 = arith.constant 0.000000e+00 : f32
    %cst_8 = arith.constant 6.000000e+00 : f32
    %8 = vector.broadcast %cst_7 : f32 to vector<256x48xf32>
    %9 = arith.maximumf %8, %7 : vector<256x48xf32>
    %10 = vector.broadcast %cst_8 : f32 to vector<256x48xf32>
    %11 = arith.minimumf %10, %9 : vector<256x48xf32>
    %12 = vector.shape_cast %11 : vector<256x48xf32> to vector<16x16x48xf32>
    %cst_9 = arith.constant 0.000000e+00 : f32
    %13 = vector.broadcast %cst_9 : f32 to vector<18x18x48xf32>
    %c0_10 = arith.constant 0 : index
    %c0_11 = arith.constant 0 : index
    %c0_12 = arith.constant 0 : index
    %14 = vector.load %arg9[%c0_10, %c0_11, %c0_12] : memref<18x18x48xf32, #tpu.memory_space<vmem>>, vector<18x18x48xf32>
    tpu.vector_store %arg9[%c0_10, %c0_11, %c0_12], %13 {strides = array<i32>} : memref<18x18x48xf32, #tpu.memory_space<vmem>>, vector<18x18x48xf32>,
    %c1 = arith.constant 1 : index
    %c1_13 = arith.constant 1 : index
    %c0_14 = arith.constant 0 : index
    %15 = vector.load %arg9[%c1, %c1_13, %c0_14] : memref<18x18x48xf32, #tpu.memory_space<vmem>>, vector<16x16x48xf32>
    tpu.vector_store %arg9[%c1, %c1_13, %c0_14], %12 {strides = array<i32>} : memref<18x18x48xf32, #tpu.memory_space<vmem>>, vector<16x16x48xf32>,
    %c0_15 = arith.constant 0 : index
    %c0_16 = arith.constant 0 : index
    %c0_17 = arith.constant 0 : index
    %16 = vector.load %arg4[%c0_15, %c0_16, %c0_17] : memref<3x3x48xf32, #tpu.memory_space<vmem>>, vector<3x3x48xf32>
    %cst_18 = arith.constant 0.000000e+00 : f32
    %17 = vector.broadcast %cst_18 : f32 to vector<16x16x48xf32>
    %c0_19 = arith.constant 0 : index
    %c0_20 = arith.constant 0 : index
    %c0_21 = arith.constant 0 : index
    %18 = vector.load %arg9[%c0_19, %c0_20, %c0_21] : memref<18x18x48xf32, #tpu.memory_space<vmem>>, vector<16x16x48xf32>
    %19 = vector.extract_strided_slice %16 {offsets = [0, 0, 0], sizes = [1, 1, 48], strides = [1, 1, 1]} : vector<3x3x48xf32> to vector<1x1x48xf32>
    %20 = vector.shape_cast %19 : vector<1x1x48xf32> to vector<48xf32>
    %21 = vector.shape_cast %20 : vector<48xf32> to vector<1x1x48xf32>
    %22 = vector.broadcast %21 : vector<1x1x48xf32> to vector<16x16x48xf32>
    %23 = arith.mulf %18, %22 : vector<16x16x48xf32>
    %24 = arith.addf %17, %23 : vector<16x16x48xf32>
    %c0_22 = arith.constant 0 : index
    %c1_23 = arith.constant 1 : index
    %c0_24 = arith.constant 0 : index
    %25 = vector.load %arg9[%c0_22, %c1_23, %c0_24] : memref<18x18x48xf32, #tpu.memory_space<vmem>>, vector<16x16x48xf32>
    %26 = vector.extract_strided_slice %16 {offsets = [0, 1, 0], sizes = [1, 1, 48], strides = [1, 1, 1]} : vector<3x3x48xf32> to vector<1x1x48xf32>
    %27 = vector.shape_cast %26 : vector<1x1x48xf32> to vector<48xf32>
    %28 = vector.shape_cast %27 : vector<48xf32> to vector<1x1x48xf32>
    %29 = vector.broadcast %28 : vector<1x1x48xf32> to vector<16x16x48xf32>
    %30 = arith.mulf %25, %29 : vector<16x16x48xf32>
    %31 = arith.addf %24, %30 : vector<16x16x48xf32>
    %c0_25 = arith.constant 0 : index
    %c2 = arith.constant 2 : index
    %c0_26 = arith.constant 0 : index
    %32 = vector.load %arg9[%c0_25, %c2, %c0_26] : memref<18x18x48xf32, #tpu.memory_space<vmem>>, vector<16x16x48xf32>
    %33 = vector.extract_strided_slice %16 {offsets = [0, 2, 0], sizes = [1, 1, 48], strides = [1, 1, 1]} : vector<3x3x48xf32> to vector<1x1x48xf32>
    %34 = vector.shape_cast %33 : vector<1x1x48xf32> to vector<48xf32>
    %35 = vector.shape_cast %34 : vector<48xf32> to vector<1x1x48xf32>
    %36 = vector.broadcast %35 : vector<1x1x48xf32> to vector<16x16x48xf32>
    %37 = arith.mulf %32, %36 : vector<16x16x48xf32>
    %38 = arith.addf %31, %37 : vector<16x16x48xf32>
    %c1_27 = arith.constant 1 : index
    %c0_28 = arith.constant 0 : index
    %c0_29 = arith.constant 0 : index
    %39 = vector.load %arg9[%c1_27, %c0_28, %c0_29] : memref<18x18x48xf32, #tpu.memory_space<vmem>>, vector<16x16x48xf32>
    %40 = vector.extract_strided_slice %16 {offsets = [1, 0, 0], sizes = [1, 1, 48], strides = [1, 1, 1]} : vector<3x3x48xf32> to vector<1x1x48xf32>
    %41 = vector.shape_cast %40 : vector<1x1x48xf32> to vector<48xf32>
    %42 = vector.shape_cast %41 : vector<48xf32> to vector<1x1x48xf32>
    %43 = vector.broadcast %42 : vector<1x1x48xf32> to vector<16x16x48xf32>
    %44 = arith.mulf %39, %43 : vector<16x16x48xf32>
    %45 = arith.addf %38, %44 : vector<16x16x48xf32>
    %c1_30 = arith.constant 1 : index
    %c1_31 = arith.constant 1 : index
    %c0_32 = arith.constant 0 : index
    %46 = vector.load %arg9[%c1_30, %c1_31, %c0_32] : memref<18x18x48xf32, #tpu.memory_space<vmem>>, vector<16x16x48xf32>
    %47 = vector.extract_strided_slice %16 {offsets = [1, 1, 0], sizes = [1, 1, 48], strides = [1, 1, 1]} : vector<3x3x48xf32> to vector<1x1x48xf32>
    %48 = vector.shape_cast %47 : vector<1x1x48xf32> to vector<48xf32>
    %49 = vector.shape_cast %48 : vector<48xf32> to vector<1x1x48xf32>
    %50 = vector.broadcast %49 : vector<1x1x48xf32> to vector<16x16x48xf32>
    %51 = arith.mulf %46, %50 : vector<16x16x48xf32>
    %52 = arith.addf %45, %51 : vector<16x16x48xf32>
    %c1_33 = arith.constant 1 : index
    %c2_34 = arith.constant 2 : index
    %c0_35 = arith.constant 0 : index
    %53 = vector.load %arg9[%c1_33, %c2_34, %c0_35] : memref<18x18x48xf32, #tpu.memory_space<vmem>>, vector<16x16x48xf32>
    %54 = vector.extract_strided_slice %16 {offsets = [1, 2, 0], sizes = [1, 1, 48], strides = [1, 1, 1]} : vector<3x3x48xf32> to vector<1x1x48xf32>
    %55 = vector.shape_cast %54 : vector<1x1x48xf32> to vector<48xf32>
    %56 = vector.shape_cast %55 : vector<48xf32> to vector<1x1x48xf32>
    %57 = vector.broadcast %56 : vector<1x1x48xf32> to vector<16x16x48xf32>
    %58 = arith.mulf %53, %57 : vector<16x16x48xf32>
    %59 = arith.addf %52, %58 : vector<16x16x48xf32>
    %c2_36 = arith.constant 2 : index
    %c0_37 = arith.constant 0 : index
    %c0_38 = arith.constant 0 : index
    %60 = vector.load %arg9[%c2_36, %c0_37, %c0_38] : memref<18x18x48xf32, #tpu.memory_space<vmem>>, vector<16x16x48xf32>
    %61 = vector.extract_strided_slice %16 {offsets = [2, 0, 0], sizes = [1, 1, 48], strides = [1, 1, 1]} : vector<3x3x48xf32> to vector<1x1x48xf32>
    %62 = vector.shape_cast %61 : vector<1x1x48xf32> to vector<48xf32>
    %63 = vector.shape_cast %62 : vector<48xf32> to vector<1x1x48xf32>
    %64 = vector.broadcast %63 : vector<1x1x48xf32> to vector<16x16x48xf32>
    %65 = arith.mulf %60, %64 : vector<16x16x48xf32>
    %66 = arith.addf %59, %65 : vector<16x16x48xf32>
    %c2_39 = arith.constant 2 : index
    %c1_40 = arith.constant 1 : index
    %c0_41 = arith.constant 0 : index
    %67 = vector.load %arg9[%c2_39, %c1_40, %c0_41] : memref<18x18x48xf32, #tpu.memory_space<vmem>>, vector<16x16x48xf32>
    %68 = vector.extract_strided_slice %16 {offsets = [2, 1, 0], sizes = [1, 1, 48], strides = [1, 1, 1]} : vector<3x3x48xf32> to vector<1x1x48xf32>
    %69 = vector.shape_cast %68 : vector<1x1x48xf32> to vector<48xf32>
    %70 = vector.shape_cast %69 : vector<48xf32> to vector<1x1x48xf32>
    %71 = vector.broadcast %70 : vector<1x1x48xf32> to vector<16x16x48xf32>
    %72 = arith.mulf %67, %71 : vector<16x16x48xf32>
    %73 = arith.addf %66, %72 : vector<16x16x48xf32>
    %c2_42 = arith.constant 2 : index
    %c2_43 = arith.constant 2 : index
    %c0_44 = arith.constant 0 : index
    %74 = vector.load %arg9[%c2_42, %c2_43, %c0_44] : memref<18x18x48xf32, #tpu.memory_space<vmem>>, vector<16x16x48xf32>
    %75 = vector.extract_strided_slice %16 {offsets = [2, 2, 0], sizes = [1, 1, 48], strides = [1, 1, 1]} : vector<3x3x48xf32> to vector<1x1x48xf32>
    %76 = vector.shape_cast %75 : vector<1x1x48xf32> to vector<48xf32>
    %77 = vector.shape_cast %76 : vector<48xf32> to vector<1x1x48xf32>
    %78 = vector.broadcast %77 : vector<1x1x48xf32> to vector<16x16x48xf32>
    %79 = arith.mulf %74, %78 : vector<16x16x48xf32>
    %80 = arith.addf %73, %79 : vector<16x16x48xf32>
    %c0_45 = arith.constant 0 : index
    %c0_46 = arith.constant 0 : index
    %81 = vector.load %arg5[%c0_45, %c0_46] : memref<1x48xf32, #tpu.memory_space<vmem>>, vector<1x48xf32>
    %82 = vector.shape_cast %81 : vector<1x48xf32> to vector<1x1x48xf32>
    %83 = vector.broadcast %82 : vector<1x1x48xf32> to vector<16x16x48xf32>
    %84 = arith.addf %80, %83 : vector<16x16x48xf32>
    %cst_47 = arith.constant 0.000000e+00 : f32
    %cst_48 = arith.constant 6.000000e+00 : f32
    %85 = vector.broadcast %cst_47 : f32 to vector<16x16x48xf32>
    %86 = arith.maximumf %85, %84 : vector<16x16x48xf32>
    %87 = vector.broadcast %cst_48 : f32 to vector<16x16x48xf32>
    %88 = arith.minimumf %87, %86 : vector<16x16x48xf32>
    %89 = vector.shape_cast %88 : vector<16x16x48xf32> to vector<256x48xf32>
    %c0_49 = arith.constant 0 : index
    %c0_50 = arith.constant 0 : index
    %90 = vector.load %arg6[%c0_49, %c0_50] : memref<48x8xf32, #tpu.memory_space<vmem>>, vector<48x8xf32>
    %cst_51 = arith.constant dense<0.000000e+00> : vector<256x8xf32>
    %91 = tpu.matmul %89, %90, %cst_51 {dimension_numbers = #tpu.dot_dimension_numbers<[1], [0], [0], [1], [0, 0, 1, 1], [], []>} : vector<256x48xf32>, vector<48x8xf32>, vector<256x8xf32> -> vector<256x8xf32>
    %c0_52 = arith.constant 0 : index
    %c0_53 = arith.constant 0 : index
    %92 = vector.load %arg7[%c0_52, %c0_53] : memref<1x8xf32, #tpu.memory_space<vmem>>, vector<1x8xf32>
    %93 = vector.broadcast %92 : vector<1x8xf32> to vector<256x8xf32>
    %94 = arith.addf %91, %93 : vector<256x8xf32>
    %95 = vector.shape_cast %94 : vector<256x8xf32> to vector<16x16x8xf32>
    %96 = arith.addf %95, %1 : vector<16x16x8xf32>
    %c0_54 = arith.constant 0 : index
    %c0_55 = arith.constant 0 : index
    %c0_56 = arith.constant 0 : index
    %c0_57 = arith.constant 0 : index
    %97 = vector.load %arg8[%c0_54, %c0_55, %c0_56, %c0_57] : memref<1x16x16x8xf32, #tpu.memory_space<vmem>>, vector<1x16x16x8xf32>
    %98 = vector.shape_cast %97 : vector<1x16x16x8xf32> to vector<16x16x8xf32>
    %99 = vector.shape_cast %96 : vector<16x16x8xf32> to vector<1x16x16x8xf32>
    tpu.vector_store %arg8[%c0_54, %c0_55, %c0_56, %c0_57], %99 {strides = array<i32>} : memref<1x16x16x8xf32, #tpu.memory_space<vmem>>, vector<1x16x16x8xf32>,
    return
  }
  func.func @transform_0(%arg0: i32) -> (i32, i32, i32, i32) {
    %c0_i32 = arith.constant 0 : i32
    %c0_i32_0 = arith.constant 0 : i32
    %c0_i32_1 = arith.constant 0 : i32
    %c0_i32_2 = arith.constant 0 : i32
    return %arg0, %c0_i32, %c0_i32_0, %c0_i32_1 : i32, i32, i32, i32
  }
  func.func @transform_1(%arg0: i32) -> (i32, i32) {
    %c0_i32 = arith.constant 0 : i32
    %c0_i32_0 = arith.constant 0 : i32
    %c0_i32_1 = arith.constant 0 : i32
    return %c0_i32, %c0_i32_0 : i32, i32
  }
  func.func @transform_2(%arg0: i32) -> (i32, i32) {
    %c0_i32 = arith.constant 0 : i32
    %c0_i32_0 = arith.constant 0 : i32
    %c0_i32_1 = arith.constant 0 : i32
    return %c0_i32, %c0_i32_0 : i32, i32
  }
  func.func @transform_3(%arg0: i32) -> (i32, i32, i32) {
    %c0_i32 = arith.constant 0 : i32
    %c0_i32_0 = arith.constant 0 : i32
    %c0_i32_1 = arith.constant 0 : i32
    %c0_i32_2 = arith.constant 0 : i32
    return %c0_i32, %c0_i32_0, %c0_i32_1 : i32, i32, i32
  }
  func.func @transform_4(%arg0: i32) -> (i32, i32) {
    %c0_i32 = arith.constant 0 : i32
    %c0_i32_0 = arith.constant 0 : i32
    %c0_i32_1 = arith.constant 0 : i32
    return %c0_i32, %c0_i32_0 : i32, i32
  }
  func.func @transform_5(%arg0: i32) -> (i32, i32) {
    %c0_i32 = arith.constant 0 : i32
    %c0_i32_0 = arith.constant 0 : i32
    %c0_i32_1 = arith.constant 0 : i32
    return %c0_i32, %c0_i32_0 : i32, i32
  }
  func.func @transform_6(%arg0: i32) -> (i32, i32) {
    %c0_i32 = arith.constant 0 : i32
    %c0_i32_0 = arith.constant 0 : i32
    %c0_i32_1 = arith.constant 0 : i32
    return %c0_i32, %c0_i32_0 : i32, i32
  }
  func.func @transform_7(%arg0: i32) -> (i32, i32, i32, i32) {
    %c0_i32 = arith.constant 0 : i32
    %c0_i32_0 = arith.constant 0 : i32
    %c0_i32_1 = arith.constant 0 : i32
    %c0_i32_2 = arith.constant 0 : i32
    return %arg0, %c0_i32, %c0_i32_0, %c0_i32_1 : i32, i32, i32, i32
  }
}

</mosaic_0001>

<llo_original>
// kernel: a_call__.1
$region0: #{a_call__.1}
  #allocation0 [shape = 'u32[]', space=smem, size = 0x4, offset = 0x4, fixed_abs, tag = 'smem constant byte address 0x4 - core index']
  #allocation1 [shape = 'u32[144,128]{1,0:T(1,128)}', space=vmem, size = 0x12000, scoped, tag = 'internal scratch']
  #allocation2 [shape = 'f32[18,18,48]{2,1,0:T(8,128)}', space=vmem, size = 0x36000, scoped, tag = 'scratch operand']
  %s0 = inlined_call_operand.vmem [shape: f32[2,16,16,8], index: 0, kind: input, shape index: {}]
  %s1 = inlined_call_operand.vmem [shape: f32[8,48], index: 1, kind: input, shape index: {}]
  %s2 = inlined_call_operand.vmem [shape: f32[1,48], index: 2, kind: input, shape index: {}]
  %s3 = inlined_call_operand.vmem [shape: f32[3,3,48], index: 3, kind: input, shape index: {}]
  %s4 = inlined_call_operand.vmem [shape: f32[1,48], index: 4, kind: input, shape index: {}]
  %s5 = inlined_call_operand.vmem [shape: f32[48,8], index: 5, kind: input, shape index: {}]
  %s6 = inlined_call_operand.vmem [shape: f32[1,8], index: 6, kind: input, shape index: {}]
  %s7 = inlined_call_operand.vmem [shape: f32[2,16,16,8], index: 7, kind: output, shape index: {}]
  %s8 = sld [smem:[#allocation0]]
  $region61: #{a_call__.1} parent=0
    _
  %s10 = ssub.s32 1, %s8
  %s11 = scalar_select 0, %s10, %s8
  loop: start=0, step=1, limit=4
  $region2: #{a_call__.1} parent=0 // loop_pre_header
    _
  $region3: #{a_call__.1} parent=0 // loop_header
    %s13 = sphi 0, %s17
    %p14 = scmp.ge.s32.totalorder %s13, 4
    %s23 = sphi 0, %s25
    %s26 = sphi 0, %s23
    %s27 = sphi 0, %s26
    %s43 = sphi 0, %s27
    %s47 = sphi 0, %s47
    %s49 = sphi 0, %s47
    %s50 = sphi 0, %s49
    %s64 = sphi 0, %s50
    %s68 = sphi 0, %s68
    %s70 = sphi 0, %s68
    %s71 = sphi 0, %s70
    %s85 = sphi 0, %s71
    %s89 = sphi 0, %s89
    %s91 = sphi 0, %s89
    %s92 = sphi 0, %s91
    %s106 = sphi 0, %s92
    %s110 = sphi 0, %s110
    %s112 = sphi 0, %s110
    %s113 = sphi 0, %s112
    %s127 = sphi 0, %s113
    %s131 = sphi 0, %s131
    %s133 = sphi 0, %s131
    %s134 = sphi 0, %s133
    %s148 = sphi 0, %s134
    %s152 = sphi 0, %s152
    %s154 = sphi 0, %s152
    %s155 = sphi 0, %s154
    %s169 = sphi 0, %s155
    %s175 = sphi 0, %s177
    %s178 = sphi 0, %s175
    %s179 = sphi 0, %s178
    %s195 = sphi 0, %s179
  $region4: #{a_call__.1} parent=0 // loop_header_branch
    %16 = sbr.rel (%p14) target = $region8
  $region5: #{a_call__.1} parent=0 // loop_body
    %s18 = ssub.s32 %s13, 1
    %s19 = ssub.s32 %s13, 2
    %s20 = sadd.s32 %s13, 1
    %s21 = ssub.s32 %s13, %s20
    %p22 = scmp.eq.s32.totalorder %s21, 0
    %s24 = sadd.s32 %s23, 1
    %s25 = scalar_select %p22, %s23, %s24
    %p28 = pneg %p22
    %p29 = scmp.eq.s32.totalorder %s13, 1
    %p30 = por %p28, %p29
    %p31 = scmp.ne.s32.totalorder %s23, %s26
    %p32 = scmp.eq.s32.totalorder %s13, 0
    %p33 = por %p31, %p32
    %p34 = scmp.ne.s32.totalorder %s23, %s26
    %p35 = scmp.eq.s32.totalorder %s18, 1
    %p36 = por %p34, %p35
    %p37 = scmp.ne.s32.totalorder %s26, %s27
    %p38 = scmp.eq.s32.totalorder %s18, 0
    %p39 = por %p37, %p38
    %p40 = scmp.ne.s32.totalorder %s26, %s27
    %p41 = scmp.eq.s32.totalorder %s19, 1
    %p42 = por %p40, %p41
    %p44 = scmp.ne.s32.totalorder %s27, %s43
    %p45 = scmp.eq.s32.totalorder %s19, 0
    %p46 = por %p44, %p45
    %s48 = sadd.s32 %s47, 1
    %p51 = scmp.eq.s32.totalorder %s13, 1
    %p52 = scmp.ne.s32.totalorder %s47, %s49
    %p53 = scmp.eq.s32.totalorder %s13, 0
    %p54 = por %p52, %p53
    %p55 = scmp.ne.s32.totalorder %s47, %s49
    %p56 = scmp.eq.s32.totalorder %s18, 1
    %p57 = por %p55, %p56
    %p58 = scmp.ne.s32.totalorder %s49, %s50
    %p59 = scmp.eq.s32.totalorder %s18, 0
    %p60 = por %p58, %p59
    %p61 = scmp.ne.s32.totalorder %s49, %s50
    %p62 = scmp.eq.s32.totalorder %s19, 1
    %p63 = por %p61, %p62
    %p65 = scmp.ne.s32.totalorder %s50, %s64
    %p66 = scmp.eq.s32.totalorder %s19, 0
    %p67 = por %p65, %p66
    %s69 = sadd.s32 %s68, 1
    %p72 = scmp.eq.s32.totalorder %s13, 1
    %p73 = scmp.ne.s32.totalorder %s68, %s70
    %p74 = scmp.eq.s32.totalorder %s13, 0
    %p75 = por %p73, %p74
    %p76 = scmp.ne.s32.totalorder %s68, %s70
    %p77 = scmp.eq.s32.totalorder %s18, 1
    %p78 = por %p76, %p77
    %p79 = scmp.ne.s32.totalorder %s70, %s71
    %p80 = scmp.eq.s32.totalorder %s18, 0
    %p81 = por %p79, %p80
    %p82 = scmp.ne.s32.totalorder %s70, %s71
    %p83 = scmp.eq.s32.totalorder %s19, 1
    %p84 = por %p82, %p83
    %p86 = scmp.ne.s32.totalorder %s71, %s85
    %p87 = scmp.eq.s32.totalorder %s19, 0
    %p88 = por %p86, %p87
    %s90 = sadd.s32 %s89, 1
    %p93 = scmp.eq.s32.totalorder %s13, 1
    %p94 = scmp.ne.s32.totalorder %s89, %s91
    %p95 = scmp.eq.s32.totalorder %s13, 0
    %p96 = por %p94, %p95
    %p97 = scmp.ne.s32.totalorder %s89, %s91
    %p98 = scmp.eq.s32.totalorder %s18, 1
    %p99 = por %p97, %p98
    %p100 = scmp.ne.s32.totalorder %s91, %s92
    %p101 = scmp.eq.s32.totalorder %s18, 0
    %p102 = por %p100, %p101
    %p103 = scmp.ne.s32.totalorder %s91, %s92
    %p104 = scmp.eq.s32.totalorder %s19, 1
    %p105 = por %p103, %p104
    %p107 = scmp.ne.s32.totalorder %s92, %s106
    %p108 = scmp.eq.s32.totalorder %s19, 0
    %p109 = por %p107, %p108
    %s111 = sadd.s32 %s110, 1
    %p114 = scmp.eq.s32.totalorder %s13, 1
    %p115 = scmp.ne.s32.totalorder %s110, %s112
    %p116 = scmp.eq.s32.totalorder %s13, 0
    %p117 = por %p115, %p116
    %p118 = scmp.ne.s32.totalorder %s110, %s112
    %p119 = scmp.eq.s32.totalorder %s18, 1
    %p120 = por %p118, %p119
    %p121 = scmp.ne.s32.totalorder %s112, %s113
    %p122 = scmp.eq.s32.totalorder %s18, 0
    %p123 = por %p121, %p122
    %p124 = scmp.ne.s32.totalorder %s112, %s113
    %p125 = scmp.eq.s32.totalorder %s19, 1
    %p126 = por %p124, %p125
    %p128 = scmp.ne.s32.totalorder %s113, %s127
    %p129 = scmp.eq.s32.totalorder %s19, 0
    %p130 = por %p128, %p129
    %s132 = sadd.s32 %s131, 1
    %p135 = scmp.eq.s32.totalorder %s13, 1
    %p136 = scmp.ne.s32.totalorder %s131, %s133
    %p137 = scmp.eq.s32.totalorder %s13, 0
    %p138 = por %p136, %p137
    %p139 = scmp.ne.s32.totalorder %s131, %s133
    %p140 = scmp.eq.s32.totalorder %s18, 1
    %p141 = por %p139, %p140
    %p142 = scmp.ne.s32.totalorder %s133, %s134
    %p143 = scmp.eq.s32.totalorder %s18, 0
    %p144 = por %p142, %p143
    %p145 = scmp.ne.s32.totalorder %s133, %s134
    %p146 = scmp.eq.s32.totalorder %s19, 1
    %p147 = por %p145, %p146
    %p149 = scmp.ne.s32.totalorder %s134, %s148
    %p150 = scmp.eq.s32.totalorder %s19, 0
    %p151 = por %p149, %p150
    %s153 = sadd.s32 %s152, 1
    %p156 = scmp.eq.s32.totalorder %s13, 1
    %p157 = scmp.ne.s32.totalorder %s152, %s154
    %p158 = scmp.eq.s32.totalorder %s13, 0
    %p159 = por %p157, %p158
    %p160 = scmp.ne.s32.totalorder %s152, %s154
    %p161 = scmp.eq.s32.totalorder %s18, 1
    %p162 = por %p160, %p161
    %p163 = scmp.ne.s32.totalorder %s154, %s155
    %p164 = scmp.eq.s32.totalorder %s18, 0
    %p165 = por %p163, %p164
    %p166 = scmp.ne.s32.totalorder %s154, %s155
    %p167 = scmp.eq.s32.totalorder %s19, 1
    %p168 = por %p166, %p167
    %p170 = scmp.ne.s32.totalorder %s155, %s169
    %p171 = scmp.eq.s32.totalorder %s19, 0
    %p172 = por %p170, %p171
    %s173 = ssub.s32 %s13, %s20
    %p174 = scmp.eq.s32.totalorder %s173, 0
    %s176 = sadd.s32 %s175, 1
    %s177 = scalar_select %p174, %s175, %s176
    %p180 = pneg %p174
    %p181 = scmp.eq.s32.totalorder %s13, 1
    %p182 = por %p180, %p181
    %p183 = scmp.ne.s32.totalorder %s175, %s178
    %p184 = scmp.eq.s32.totalorder %s13, 0
    %p185 = por %p183, %p184
    %p186 = scmp.ne.s32.totalorder %s175, %s178
    %p187 = scmp.eq.s32.totalorder %s18, 1
    %p188 = por %p186, %p187
    %p189 = scmp.ne.s32.totalorder %s178, %s179
    %p190 = scmp.eq.s32.totalorder %s18, 0
    %p191 = por %p189, %p190
    %p192 = scmp.ne.s32.totalorder %s178, %s179
    %p193 = scmp.eq.s32.totalorder %s19, 1
    %p194 = por %p192, %p193
    %p196 = scmp.ne.s32.totalorder %s179, %s195
    %p197 = scmp.eq.s32.totalorder %s19, 0
    %p198 = por %p196, %p197
    %p199 = scmp.le.s32.totalorder 1, %s13
    %p200 = scmp.lt.s32.totalorder %s13, 3
    %p201 = pnand %p199, %p200
    %p202 = pneg %p201
    // Predicated region
    $region9: #{a_call__.1} parent=5 // pred_check
      _
    $region10: #{a_call__.1} parent=5 // pred_check_branch
      %204 = sbr.rel (%p201) target = $region12
    $region11: #{a_call__.1} parent=5 // pred_region
      %s205 = ssub.s32 %s13, 1
      // Predicated region
      $region13: #{a_call__.1} parent=11 // pred_check
        %p206 = pneg %p60
      $region14: #{a_call__.1} parent=11 // pred_check_branch
        %208 = sbr.rel (%p206) target = $region16
      $region15: #{a_call__.1} parent=11 // pred_region
        _
      $region16: #{a_call__.1} parent=11 // pred_fallthru
        _
      // Predicated region
      $region17: #{a_call__.1} parent=11 // pred_check
        %p209 = pneg %p81
      $region18: #{a_call__.1} parent=11 // pred_check_branch
        %211 = sbr.rel (%p209) target = $region20
      $region19: #{a_call__.1} parent=11 // pred_region
        _
      $region20: #{a_call__.1} parent=11 // pred_fallthru
        _
      // Predicated region
      $region21: #{a_call__.1} parent=11 // pred_check
        %p212 = pneg %p102
      $region22: #{a_call__.1} parent=11 // pred_check_branch
        %214 = sbr.rel (%p212) target = $region24
      $region23: #{a_call__.1} parent=11 // pred_region
        _
      $region24: #{a_call__.1} parent=11 // pred_fallthru
        _
      // Predicated region
      $region25: #{a_call__.1} parent=11 // pred_check
        %p215 = pneg %p123
      $region26: #{a_call__.1} parent=11 // pred_check_branch
        %217 = sbr.rel (%p215) target = $region28
      $region27: #{a_call__.1} parent=11 // pred_region
        _
      $region28: #{a_call__.1} parent=11 // pred_fallthru
        _
      // Predicated region
      $region29: #{a_call__.1} parent=11 // pred_check
        %p218 = pneg %p144
      $region30: #{a_call__.1} parent=11 // pred_check_branch
        %220 = sbr.rel (%p218) target = $region32
      $region31: #{a_call__.1} parent=11 // pred_region
        _
      $region32: #{a_call__.1} parent=11 // pred_fallthru
        _
      // Predicated region
      $region33: #{a_call__.1} parent=11 // pred_check
        %p221 = pneg %p165
      $region34: #{a_call__.1} parent=11 // pred_check_branch
        %223 = sbr.rel (%p221) target = $region36
      $region35: #{a_call__.1} parent=11 // pred_region
        _
      $region36: #{a_call__.1} parent=11 // pred_fallthru
        _
    $region12: #{a_call__.1} parent=5 // pred_fallthru
      _
    %p224 = scmp.lt.s32.totalorder %s13, 2
    // Predicated region
    $region37: #{a_call__.1} parent=5 // pred_check
      %p225 = pneg %p224
    $region38: #{a_call__.1} parent=5 // pred_check_branch
      %227 = sbr.rel (%p225) target = $region40
    $region39: #{a_call__.1} parent=5 // pred_region
      // Predicated region
      $region41: #{a_call__.1} parent=39 // pred_check
        %p228 = pneg %p33
      $region42: #{a_call__.1} parent=39 // pred_check_branch
        %230 = sbr.rel (%p228) target = $region44
      $region43: #{a_call__.1} parent=39 // pred_region
        %p231 = scmp.lt.s32.totalorder %s13, 1
        %s232 = scalar_select %p231, %s13, 1
        %s233 = smul.addr %s232, 32
        %s234 = smul.addr %s233, 8
        %s235 = scalar_lea.vmem %s0, %s234
      $region44: #{a_call__.1} parent=39 // pred_fallthru
        _
    $region40: #{a_call__.1} parent=5 // pred_fallthru
      _
    %p236 = scmp.le.s32.totalorder 1, %s13
    %p237 = scmp.lt.s32.totalorder %s13, 3
    %p238 = pnand %p236, %p237
    %p239 = pneg %p238
    // Predicated region
    $region45: #{a_call__.1} parent=5 // pred_check
      _
    $region46: #{a_call__.1} parent=5 // pred_check_branch
      %241 = sbr.rel (%p238) target = $region48
    $region47: #{a_call__.1} parent=5 // pred_region
      %s242 = ssub.s32 %s13, 1
      %p243 = scmp.lt.s32.totalorder %s18, 1
      %s244 = scalar_select %p243, %s18, 1
      %s245 = smul.addr %s244, 32
      %s246 = smul.addr %s245, 8
      %s247 = scalar_lea.vmem %s0, %s246
      %p248 = pneg %p39
      %p249 = pneg %p36
      %p250 = pneg %p60
      %p251 = pneg %p57
      %p252 = pneg %p81
      %p253 = pneg %p78
      %p254 = pneg %p102
      %p255 = pneg %p99
      %p256 = pneg %p123
      %p257 = pneg %p120
      %p258 = pneg %p144
      %p259 = pneg %p141
      %p260 = pneg %p165
      %p261 = pneg %p162
      %p262 = pneg %p191
      %p263 = pneg %p188
      %p264 = scmp.lt.s32.totalorder %s18, 1
      %s265 = scalar_select %p264, %s18, 1
      %s266 = smul.addr %s265, 32
      %s267 = smul.addr %s266, 8
      %s268 = scalar_lea.vmem %s7, %s267
      %p269 = scmp.lt.s32.totalorder %s18, 1
      %s270 = scalar_select %p269, %s18, 1
      %s271 = smul.addr %s270, 32
      %s272 = smul.addr %s271, 8
      %s273 = scalar_lea.vmem %s0, %s272
      %p274 = scmp.lt.s32.totalorder %s18, 1
      %s275 = scalar_select %p274, %s18, 1
      %s276 = smul.addr %s275, 32
      %s277 = smul.addr %s276, 8
      %s278 = scalar_lea.vmem %s7, %s277
      %v279 = vld [vmem:[%s273] sm:$0xff]
      %v280 = vld [vmem:[%s273 + $0x8] sm:$0xff]
      %v281 = vld [vmem:[%s273 + $0x10] sm:$0xff]
      %v282 = vld [vmem:[%s273 + $0x18] sm:$0xff]
      %v283 = vld [vmem:[%s273 + $0x20] sm:$0xff]
      %v284 = vld [vmem:[%s273 + $0x28] sm:$0xff]
      %v285 = vld [vmem:[%s273 + $0x30] sm:$0xff]
      %v286 = vld [vmem:[%s273 + $0x38] sm:$0xff]
      %v287 = vld [vmem:[%s273 + $0x40] sm:$0xff]
      %v288 = vld [vmem:[%s273 + $0x48] sm:$0xff]
      %v289 = vld [vmem:[%s273 + $0x50] sm:$0xff]
      %v290 = vld [vmem:[%s273 + $0x58] sm:$0xff]
      %v291 = vld [vmem:[%s273 + $0x60] sm:$0xff]
      %v292 = vld [vmem:[%s273 + $0x68] sm:$0xff]
      %v293 = vld [vmem:[%s273 + $0x70] sm:$0xff]
      %v294 = vld [vmem:[%s273 + $0x78] sm:$0xff]
      %v295 = vld [vmem:[%s273 + $0x80] sm:$0xff]
      %v296 = vld [vmem:[%s273 + $0x88] sm:$0xff]
      %v297 = vld [vmem:[%s273 + $0x90] sm:$0xff]
      %v298 = vld [vmem:[%s273 + $0x98] sm:$0xff]
      %v299 = vld [vmem:[%s273 + $0xa0] sm:$0xff]
      %v300 = vld [vmem:[%s273 + $0xa8] sm:$0xff]
      %v301 = vld [vmem:[%s273 + $0xb0] sm:$0xff]
      %v302 = vld [vmem:[%s273 + $0xb8] sm:$0xff]
      %v303 = vld [vmem:[%s273 + $0xc0] sm:$0xff]
      %v304 = vld [vmem:[%s273 + $0xc8] sm:$0xff]
      %v305 = vld [vmem:[%s273 + $0xd0] sm:$0xff]
      %v306 = vld [vmem:[%s273 + $0xd8] sm:$0xff]
      %v307 = vld [vmem:[%s273 + $0xe0] sm:$0xff]
      %v308 = vld [vmem:[%s273 + $0xe8] sm:$0xff]
      %v309 = vld [vmem:[%s273 + $0xf0] sm:$0xff]
      %v310 = vld [vmem:[%s273 + $0xf8] sm:$0xff]
      %v311 = vld [vmem:[%s1] sm:$0xff]
      %v312 = vld [vmem:[%s2] sm:$0x1]
      %v314 = vlaneseq
      %v315 = vshrl.u32 %v314, 7
      %v316 = vsub.s32 0, %v315
      %v317 = vrot.slane %v312, %v316
      %vm319 = vcmask 64512
      %v321 = vsel %vm319, %v279, 0
      %v324 = vsel %vm319, %v280, 0
      %v327 = vsel %vm319, %v281, 0
      %v330 = vsel %vm319, %v282, 0
      %v333 = vsel %vm319, %v283, 0
      %v336 = vsel %vm319, %v284, 0
      %v339 = vsel %vm319, %v285, 0
      %v342 = vsel %vm319, %v286, 0
      %v345 = vsel %vm319, %v287, 0
      %v348 = vsel %vm319, %v288, 0
      %v351 = vsel %vm319, %v289, 0
      %v354 = vsel %vm319, %v290, 0
      %v357 = vsel %vm319, %v291, 0
      %v360 = vsel %vm319, %v292, 0
      %v363 = vsel %vm319, %v293, 0
      %v366 = vsel %vm319, %v294, 0
      %v369 = vsel %vm319, %v295, 0
      %v372 = vsel %vm319, %v296, 0
      %v375 = vsel %vm319, %v297, 0
      %v378 = vsel %vm319, %v298, 0
      %v381 = vsel %vm319, %v299, 0
      %v384 = vsel %vm319, %v300, 0
      %v387 = vsel %vm319, %v301, 0
      %v390 = vsel %vm319, %v302, 0
      %v393 = vsel %vm319, %v303, 0
      %v396 = vsel %vm319, %v304, 0
      %v399 = vsel %vm319, %v305, 0
      %v402 = vsel %vm319, %v306, 0
      %v405 = vsel %vm319, %v307, 0
      %v408 = vsel %vm319, %v308, 0
      %v411 = vsel %vm319, %v309, 0
      %v414 = vsel %vm319, %v310, 0
      %416 = vmatprep.subr.mxu0 0.0
      %417 = vmatpush1.msra.mxu0 %v311
      %418 = vmatprep.subr.mxu0 0.0
      %419 = vmatpush1.msra.mxu0 0.0
      %420 = vmatprep.subr.mxu0 0.0
      %421 = vmatpush1.msra.mxu0 0.0
      %422 = vmatprep.subr.mxu0 0.0
      %423 = vmatpush1.msra.mxu0 0.0
      %424 = vmatprep.subr.mxu0 0.0
      %425 = vmatpush1.msra.mxu0 0.0
      %426 = vmatprep.subr.mxu0 0.0
      %427 = vmatpush1.msra.mxu0 0.0
      %428 = vmatprep.subr.mxu0 0.0
      %429 = vmatpush1.msra.mxu0 0.0
      %430 = vmatprep.subr.mxu0 0.0
      %431 = vmatpush1.msra.mxu0 0.0
      %432 = vmatprep.subr.mxu0 0.0
      %433 = vmatpush1.msra.mxu0 0.0
      %434 = vmatprep.subr.mxu0 0.0
      %435 = vmatpush1.msra.mxu0 0.0
      %436 = vmatprep.subr.mxu0 0.0
      %437 = vmatpush1.msra.mxu0 0.0
      %438 = vmatprep.subr.mxu0 0.0
      %439 = vmatpush1.msra.mxu0 0.0
      %440 = vmatprep.subr.mxu0 0.0
      %441 = vmatpush1.msra.mxu0 0.0
      %442 = vmatprep.subr.mxu0 0.0
      %443 = vmatpush1.msra.mxu0 0.0
      %444 = vmatprep.subr.mxu0 0.0
      %445 = vmatpush1.msra.mxu0 0.0
      %446 = vmatprep.subr.mxu0 0.0
      %447 = vmatpush1.msra.mxu0 0.0
      %448 = vmatprep.subr.mxu0 0.0
      %449 = vmatpush1.msra.mxu0 0.0
      %450 = vmatprep.subr.mxu0 0.0
      %451 = vmatpush1.msra.mxu0 0.0
      %452 = vmatprep.subr.mxu0 0.0
      %453 = vmatpush1.msra.mxu0 0.0
      %454 = vmatprep.subr.mxu0 0.0
      %455 = vmatpush1.msra.mxu0 0.0
      %456 = vmatprep.subr.mxu0 0.0
      %457 = vmatpush1.msra.mxu0 0.0
      %458 = vmatprep.subr.mxu0 0.0
      %459 = vmatpush1.msra.mxu0 0.0
      %460 = vmatprep.subr.mxu0 0.0
      %461 = vmatpush1.msra.mxu0 0.0
      %462 = vmatprep.subr.mxu0 0.0
      %463 = vmatpush1.msra.mxu0 0.0
      %464 = vmatprep.subr.mxu0 0.0
      %465 = vmatpush1.msra.mxu0 0.0
      %466 = vmatprep.subr.mxu0 0.0
      %467 = vmatpush1.msra.mxu0 0.0
      %468 = vmatprep.subr.mxu0 0.0
      %469 = vmatpush1.msra.mxu0 0.0
      %470 = vmatprep.subr.mxu0 0.0
      %471 = vmatpush1.msra.mxu0 0.0
      %472 = vmatprep.subr.mxu0 0.0
      %473 = vmatpush1.msra.mxu0 0.0
      %474 = vmatprep.subr.mxu0 0.0
      %475 = vmatpush1.msra.mxu0 0.0
      %476 = vmatprep.subr.mxu0 0.0
      %477 = vmatpush1.msra.mxu0 0.0
      %478 = vmatprep.subr.mxu0 0.0
      %479 = vmatpush1.msra.mxu0 0.0
      %480 = vmatprep.mubr.f32.mxu0 0.0
      %481 = vmatmul.mubr.f32.gmra.mrb[0].mxu0 %v321
      %v482 = vpop.f32.mrb[0].mxu0
      %v483 = vadd.f32 %v317, %v482
      %v484 = vpop.f32.mrb[0].mxu0
      %485 = vmatprep.mubr.f32.mxu0 0.0
      %486 = vmatmul.mubr.f32.gmra.mrb[0].mxu0 %v324
      %v487 = vpop.f32.mrb[0].mxu0
      %v488 = vadd.f32 %v317, %v487
      %v489 = vpop.f32.mrb[0].mxu0
      %490 = vmatprep.mubr.f32.mxu0 0.0
      %491 = vmatmul.mubr.f32.gmra.mrb[0].mxu0 %v327
      %v492 = vpop.f32.mrb[0].mxu0
      %v493 = vadd.f32 %v317, %v492
      %v494 = vpop.f32.mrb[0].mxu0
      %495 = vmatprep.mubr.f32.mxu0 0.0
      %496 = vmatmul.mubr.f32.gmra.mrb[0].mxu0 %v330
      %v497 = vpop.f32.mrb[0].mxu0
      %v498 = vadd.f32 %v317, %v497
      %v499 = vpop.f32.mrb[0].mxu0
      %500 = vmatprep.mubr.f32.mxu0 0.0
      %501 = vmatmul.mubr.f32.gmra.mrb[0].mxu0 %v333
      %v502 = vpop.f32.mrb[0].mxu0
      %v503 = vadd.f32 %v317, %v502
      %v504 = vpop.f32.mrb[0].mxu0
      %505 = vmatprep.mubr.f32.mxu0 0.0
      %506 = vmatmul.mubr.f32.gmra.mrb[0].mxu0 %v336
      %v507 = vpop.f32.mrb[0].mxu0
      %v508 = vadd.f32 %v317, %v507
      %v509 = vpop.f32.mrb[0].mxu0
      %510 = vmatprep.mubr.f32.mxu0 0.0
      %511 = vmatmul.mubr.f32.gmra.mrb[0].mxu0 %v339
      %v512 = vpop.f32.mrb[0].mxu0
      %v513 = vadd.f32 %v317, %v512
      %v514 = vpop.f32.mrb[0].mxu0
      %515 = vmatprep.mubr.f32.mxu0 0.0
      %516 = vmatmul.mubr.f32.gmra.mrb[0].mxu0 %v342
      %v517 = vpop.f32.mrb[0].mxu0
      %v518 = vadd.f32 %v317, %v517
      %v519 = vpop.f32.mrb[0].mxu0
      %520 = vmatprep.mubr.f32.mxu0 0.0
      %521 = vmatmul.mubr.f32.gmra.mrb[0].mxu0 %v345
      %v522 = vpop.f32.mrb[0].mxu0
      %v523 = vadd.f32 %v317, %v522
      %v524 = vpop.f32.mrb[0].mxu0
      %525 = vmatprep.mubr.f32.mxu0 0.0
      %526 = vmatmul.mubr.f32.gmra.mrb[0].mxu0 %v348
      %v527 = vpop.f32.mrb[0].mxu0
      %v528 = vadd.f32 %v317, %v527
      %v529 = vpop.f32.mrb[0].mxu0
      %530 = vmatprep.mubr.f32.mxu0 0.0
      %531 = vmatmul.mubr.f32.gmra.mrb[0].mxu0 %v351
      %v532 = vpop.f32.mrb[0].mxu0
      %v533 = vadd.f32 %v317, %v532
      %v534 = vpop.f32.mrb[0].mxu0
      %535 = vmatprep.mubr.f32.mxu0 0.0
      %536 = vmatmul.mubr.f32.gmra.mrb[0].mxu0 %v354
      %v537 = vpop.f32.mrb[0].mxu0
      %v538 = vadd.f32 %v317, %v537
      %v539 = vpop.f32.mrb[0].mxu0
      %540 = vmatprep.mubr.f32.mxu0 0.0
      %541 = vmatmul.mubr.f32.gmra.mrb[0].mxu0 %v357
      %v542 = vpop.f32.mrb[0].mxu0
      %v543 = vadd.f32 %v317, %v542
      %v544 = vpop.f32.mrb[0].mxu0
      %545 = vmatprep.mubr.f32.mxu0 0.0
      %546 = vmatmul.mubr.f32.gmra.mrb[0].mxu0 %v360
      %v547 = vpop.f32.mrb[0].mxu0
      %v548 = vadd.f32 %v317, %v547
      %v549 = vpop.f32.mrb[0].mxu0
      %550 = vmatprep.mubr.f32.mxu0 0.0
      %551 = vmatmul.mubr.f32.gmra.mrb[0].mxu0 %v363
      %v552 = vpop.f32.mrb[0].mxu0
      %v553 = vadd.f32 %v317, %v552
      %v554 = vpop.f32.mrb[0].mxu0
      %555 = vmatprep.mubr.f32.mxu0 0.0
      %556 = vmatmul.mubr.f32.gmra.mrb[0].mxu0 %v366
      %v557 = vpop.f32.mrb[0].mxu0
      %v558 = vadd.f32 %v317, %v557
      %v559 = vpop.f32.mrb[0].mxu0
      %560 = vmatprep.mubr.f32.mxu0 0.0
      %561 = vmatmul.mubr.f32.gmra.mrb[0].mxu0 %v369
      %v562 = vpop.f32.mrb[0].mxu0
      %v563 = vadd.f32 %v317, %v562
      %v564 = vpop.f32.mrb[0].mxu0
      %565 = vmatprep.mubr.f32.mxu0 0.0
      %566 = vmatmul.mubr.f32.gmra.mrb[0].mxu0 %v372
      %v567 = vpop.f32.mrb[0].mxu0
      %v568 = vadd.f32 %v317, %v567
      %v569 = vpop.f32.mrb[0].mxu0
      %570 = vmatprep.mubr.f32.mxu0 0.0
      %571 = vmatmul.mubr.f32.gmra.mrb[0].mxu0 %v375
      %v572 = vpop.f32.mrb[0].mxu0
      %v573 = vadd.f32 %v317, %v572
      %v574 = vpop.f32.mrb[0].mxu0
      %575 = vmatprep.mubr.f32.mxu0 0.0
      %576 = vmatmul.mubr.f32.gmra.mrb[0].mxu0 %v378
      %v577 = vpop.f32.mrb[0].mxu0
      %v578 = vadd.f32 %v317, %v577
      %v579 = vpop.f32.mrb[0].mxu0
      %580 = vmatprep.mubr.f32.mxu0 0.0
      %581 = vmatmul.mubr.f32.gmra.mrb[0].mxu0 %v381
      %v582 = vpop.f32.mrb[0].mxu0
      %v583 = vadd.f32 %v317, %v582
      %v584 = vpop.f32.mrb[0].mxu0
      %585 = vmatprep.mubr.f32.mxu0 0.0
      %586 = vmatmul.mubr.f32.gmra.mrb[0].mxu0 %v384
      %v587 = vpop.f32.mrb[0].mxu0
      %v588 = vadd.f32 %v317, %v587
      %v589 = vpop.f32.mrb[0].mxu0
      %590 = vmatprep.mubr.f32.mxu0 0.0
      %591 = vmatmul.mubr.f32.gmra.mrb[0].mxu0 %v387
      %v592 = vpop.f32.mrb[0].mxu0
      %v593 = vadd.f32 %v317, %v592
      %v594 = vpop.f32.mrb[0].mxu0
      %595 = vmatprep.mubr.f32.mxu0 0.0
      %596 = vmatmul.mubr.f32.gmra.mrb[0].mxu0 %v390
      %v597 = vpop.f32.mrb[0].mxu0
      %v598 = vadd.f32 %v317, %v597
      %v599 = vpop.f32.mrb[0].mxu0
      %600 = vmatprep.mubr.f32.mxu0 0.0
      %601 = vmatmul.mubr.f32.gmra.mrb[0].mxu0 %v393
      %v602 = vpop.f32.mrb[0].mxu0
      %v603 = vadd.f32 %v317, %v602
      %v604 = vpop.f32.mrb[0].mxu0
      %605 = vmatprep.mubr.f32.mxu0 0.0
      %606 = vmatmul.mubr.f32.gmra.mrb[0].mxu0 %v396
      %v607 = vpop.f32.mrb[0].mxu0
      %v608 = vadd.f32 %v317, %v607
      %v609 = vpop.f32.mrb[0].mxu0
      %610 = vmatprep.mubr.f32.mxu0 0.0
      %611 = vmatmul.mubr.f32.gmra.mrb[0].mxu0 %v399
      %v612 = vpop.f32.mrb[0].mxu0
      %v613 = vadd.f32 %v317, %v612
      %v614 = vpop.f32.mrb[0].mxu0
      %615 = vmatprep.mubr.f32.mxu0 0.0
      %616 = vmatmul.mubr.f32.gmra.mrb[0].mxu0 %v402
      %v617 = vpop.f32.mrb[0].mxu0
      %v618 = vadd.f32 %v317, %v617
      %v619 = vpop.f32.mrb[0].mxu0
      %620 = vmatprep.mubr.f32.mxu0 0.0
      %621 = vmatmul.mubr.f32.gmra.mrb[0].mxu0 %v405
      %v622 = vpop.f32.mrb[0].mxu0
      %v623 = vadd.f32 %v317, %v622
      %v624 = vpop.f32.mrb[0].mxu0
      %625 = vmatprep.mubr.f32.mxu0 0.0
      %626 = vmatmul.mubr.f32.gmra.mrb[0].mxu0 %v408
      %v627 = vpop.f32.mrb[0].mxu0
      %v628 = vadd.f32 %v317, %v627
      %v629 = vpop.f32.mrb[0].mxu0
      %630 = vmatprep.mubr.f32.mxu0 0.0
      %631 = vmatmul.mubr.f32.gmra.mrb[0].mxu0 %v411
      %v632 = vpop.f32.mrb[0].mxu0
      %v633 = vadd.f32 %v317, %v632
      %v634 = vpop.f32.mrb[0].mxu0
      %635 = vmatprep.mubr.f32.mxu0 0.0
      %636 = vmatmul.mubr.f32.gmra.mrb[0].mxu0 %v414
      %v637 = vpop.f32.mrb[0].mxu0
      %v638 = vadd.f32 %v317, %v637
      %v639 = vpop.f32.mrb[0].mxu0
      %640 = vdwg.mxu0
      %v641 = vmax.f32 %v483, 0.0
      %v642 = vmax.f32 %v488, 0.0
      %v643 = vmax.f32 %v493, 0.0
      %v644 = vmax.f32 %v498, 0.0
      %v645 = vmax.f32 %v503, 0.0
      %v646 = vmax.f32 %v508, 0.0
      %v647 = vmax.f32 %v513, 0.0
      %v648 = vmax.f32 %v518, 0.0
      %v649 = vmax.f32 %v523, 0.0
      %v650 = vmax.f32 %v528, 0.0
      %v651 = vmax.f32 %v533, 0.0
      %v652 = vmax.f32 %v538, 0.0
      %v653 = vmax.f32 %v543, 0.0
      %v654 = vmax.f32 %v548, 0.0
      %v655 = vmax.f32 %v553, 0.0
      %v656 = vmax.f32 %v558, 0.0
      %v657 = vmax.f32 %v563, 0.0
      %v658 = vmax.f32 %v568, 0.0
      %v659 = vmax.f32 %v573, 0.0
      %v660 = vmax.f32 %v578, 0.0
      %v661 = vmax.f32 %v583, 0.0
      %v662 = vmax.f32 %v588, 0.0
      %v663 = vmax.f32 %v593, 0.0
      %v664 = vmax.f32 %v598, 0.0
      %v665 = vmax.f32 %v603, 0.0
      %v666 = vmax.f32 %v608, 0.0
      %v667 = vmax.f32 %v613, 0.0
      %v668 = vmax.f32 %v618, 0.0
      %v669 = vmax.f32 %v623, 0.0
      %v670 = vmax.f32 %v628, 0.0
      %v671 = vmax.f32 %v633, 0.0
      %v672 = vmax.f32 %v638, 0.0
      %v673 = vmin.f32 %v641, 6.0
      %v674 = vmin.f32 %v642, 6.0
      %v675 = vmin.f32 %v643, 6.0
      %v676 = vmin.f32 %v644, 6.0
      %v677 = vmin.f32 %v645, 6.0
      %v678 = vmin.f32 %v646, 6.0
      %v679 = vmin.f32 %v647, 6.0
      %v680 = vmin.f32 %v648, 6.0
      %v681 = vmin.f32 %v649, 6.0
      %v682 = vmin.f32 %v650, 6.0
      %v683 = vmin.f32 %v651, 6.0
      %v684 = vmin.f32 %v652, 6.0
      %v685 = vmin.f32 %v653, 6.0
      %v686 = vmin.f32 %v654, 6.0
      %v687 = vmin.f32 %v655, 6.0
      %v688 = vmin.f32 %v656, 6.0
      %v689 = vmin.f32 %v657, 6.0
      %v690 = vmin.f32 %v658, 6.0
      %v691 = vmin.f32 %v659, 6.0
      %v692 = vmin.f32 %v660, 6.0
      %v693 = vmin.f32 %v661, 6.0
      %v694 = vmin.f32 %v662, 6.0
      %v695 = vmin.f32 %v663, 6.0
      %v696 = vmin.f32 %v664, 6.0
      %v697 = vmin.f32 %v665, 6.0
      %v698 = vmin.f32 %v666, 6.0
      %v699 = vmin.f32 %v667, 6.0
      %v700 = vmin.f32 %v668, 6.0
      %v701 = vmin.f32 %v669, 6.0
      %v702 = vmin.f32 %v670, 6.0
      %v703 = vmin.f32 %v671, 6.0
      %v704 = vmin.f32 %v672, 6.0
      %vm705 = vcmask 392192
      %706 = vst.msk [vmem:[#allocation2] sm:$0xff] %vm705, 0.0
      %707 = vst.msk [vmem:[#allocation2 + $0x8] sm:$0xff] %vm705, 0.0
      %vm708 = vcmask 386048
      %709 = vst.msk [vmem:[#allocation2 + $0x10] sm:$0x3] %vm708, 0.0
      %710 = vst.msk [vmem:[#allocation2 + $0x18] sm:$0xff] %vm705, 0.0
      %711 = vst.msk [vmem:[#allocation2 + $0x20] sm:$0xff] %vm705, 0.0
      %712 = vst.msk [vmem:[#allocation2 + $0x28] sm:$0x3] %vm708, 0.0
      %713 = vst.msk [vmem:[#allocation2 + $0x30] sm:$0xff] %vm705, 0.0
      %714 = vst.msk [vmem:[#allocation2 + $0x38] sm:$0xff] %vm705, 0.0
      %715 = vst.msk [vmem:[#allocation2 + $0x40] sm:$0x3] %vm708, 0.0
      %716 = vst.msk [vmem:[#allocation2 + $0x48] sm:$0xff] %vm705, 0.0
      %717 = vst.msk [vmem:[#allocation2 + $0x50] sm:$0xff] %vm705, 0.0
      %718 = vst.msk [vmem:[#allocation2 + $0x58] sm:$0x3] %vm708, 0.0
      %719 = vst.msk [vmem:[#allocation2 + $0x60] sm:$0xff] %vm705, 0.0
      %720 = vst.msk [vmem:[#allocation2 + $0x68] sm:$0xff] %vm705, 0.0
      %721 = vst.msk [vmem:[#allocation2 + $0x70] sm:$0x3] %vm708, 0.0
      %722 = vst.msk [vmem:[#allocation2 + $0x78] sm:$0xff] %vm705, 0.0
      %723 = vst.msk [vmem:[#allocation2 + $0x80] sm:$0xff] %vm705, 0.0
      %724 = vst.msk [vmem:[#allocation2 + $0x88] sm:$0x3] %vm708, 0.0
      %725 = vst.msk [vmem:[#allocation2 + $0x90] sm:$0xff] %vm705, 0.0
      %726 = vst.msk [vmem:[#allocation2 + $0x98] sm:$0xff] %vm705, 0.0
      %727 = vst.msk [vmem:[#allocation2 + $0xa0] sm:$0x3] %vm708, 0.0
      %728 = vst.msk [vmem:[#allocation2 + $0xa8] sm:$0xff] %vm705, 0.0
      %729 = vst.msk [vmem:[#allocation2 + $0xb0] sm:$0xff] %vm705, 0.0
      %730 = vst.msk [vmem:[#allocation2 + $0xb8] sm:$0x3] %vm708, 0.0
      %731 = vst.msk [vmem:[#allocation2 + $0xc0] sm:$0xff] %vm705, 0.0
      %732 = vst.msk [vmem:[#allocation2 + $0xc8] sm:$0xff] %vm705, 0.0
      %733 = vst.msk [vmem:[#allocation2 + $0xd0] sm:$0x3] %vm708, 0.0
      %734 = vst.msk [vmem:[#allocation2 + $0xd8] sm:$0xff] %vm705, 0.0
      %735 = vst.msk [vmem:[#allocation2 + $0xe0] sm:$0xff] %vm705, 0.0
      %736 = vst.msk [vmem:[#allocation2 + $0xe8] sm:$0x3] %vm708, 0.0
      %737 = vst.msk [vmem:[#allocation2 + $0xf0] sm:$0xff] %vm705, 0.0
      %738 = vst.msk [vmem:[#allocation2 + $0xf8] sm:$0xff] %vm705, 0.0
      %739 = vst.msk [vmem:[#allocation2 + $0x100] sm:$0x3] %vm708, 0.0
      %740 = vst.msk [vmem:[#allocation2 + $0x108] sm:$0xff] %vm705, 0.0
      %741 = vst.msk [vmem:[#allocation2 + $0x110] sm:$0xff] %vm705, 0.0
      %742 = vst.msk [vmem:[#allocation2 + $0x118] sm:$0x3] %vm708, 0.0
      %743 = vst.msk [vmem:[#allocation2 + $0x120] sm:$0xff] %vm705, 0.0
      %744 = vst.msk [vmem:[#allocation2 + $0x128] sm:$0xff] %vm705, 0.0
      %745 = vst.msk [vmem:[#allocation2 + $0x130] sm:$0x3] %vm708, 0.0
      %746 = vst.msk [vmem:[#allocation2 + $0x138] sm:$0xff] %vm705, 0.0
      %747 = vst.msk [vmem:[#allocation2 + $0x140] sm:$0xff] %vm705, 0.0
      %748 = vst.msk [vmem:[#allocation2 + $0x148] sm:$0x3] %vm708, 0.0
      %749 = vst.msk [vmem:[#allocation2 + $0x150] sm:$0xff] %vm705, 0.0
      %750 = vst.msk [vmem:[#allocation2 + $0x158] sm:$0xff] %vm705, 0.0
      %751 = vst.msk [vmem:[#allocation2 + $0x160] sm:$0x3] %vm708, 0.0
      %752 = vst.msk [vmem:[#allocation2 + $0x168] sm:$0xff] %vm705, 0.0
      %753 = vst.msk [vmem:[#allocation2 + $0x170] sm:$0xff] %vm705, 0.0
      %754 = vst.msk [vmem:[#allocation2 + $0x178] sm:$0x3] %vm708, 0.0
      %755 = vst.msk [vmem:[#allocation2 + $0x180] sm:$0xff] %vm705, 0.0
      %756 = vst.msk [vmem:[#allocation2 + $0x188] sm:$0xff] %vm705, 0.0
      %757 = vst.msk [vmem:[#allocation2 + $0x190] sm:$0x3] %vm708, 0.0
      %758 = vst.msk [vmem:[#allocation2 + $0x198] sm:$0xff] %vm705, 0.0
      %759 = vst.msk [vmem:[#allocation2 + $0x1a0] sm:$0xff] %vm705, 0.0
      %760 = vst.msk [vmem:[#allocation2 + $0x1a8] sm:$0x3] %vm708, 0.0
      %s761 = scalar_lea.vmem [#allocation2], 24
      %762 = vst.msk [vmem:[%s761 + $0x1] sm:$0xff] %vm705, %v673
      %763 = vst.msk [vmem:[%s761 + $0x9] sm:$0xff] %vm705, %v674
      %764 = vst.msk [vmem:[%s761 + $0x19] sm:$0xff] %vm705, %v675
      %765 = vst.msk [vmem:[%s761 + $0x21] sm:$0xff] %vm705, %v676
      %766 = vst.msk [vmem:[%s761 + $0x31] sm:$0xff] %vm705, %v677
      %767 = vst.msk [vmem:[%s761 + $0x39] sm:$0xff] %vm705, %v678
      %768 = vst.msk [vmem:[%s761 + $0x49] sm:$0xff] %vm705, %v679
      %769 = vst.msk [vmem:[%s761 + $0x51] sm:$0xff] %vm705, %v680
      %770 = vst.msk [vmem:[%s761 + $0x61] sm:$0xff] %vm705, %v681
      %771 = vst.msk [vmem:[%s761 + $0x69] sm:$0xff] %vm705, %v682
      %772 = vst.msk [vmem:[%s761 + $0x79] sm:$0xff] %vm705, %v683
      %773 = vst.msk [vmem:[%s761 + $0x81] sm:$0xff] %vm705, %v684
      %774 = vst.msk [vmem:[%s761 + $0x91] sm:$0xff] %vm705, %v685
      %775 = vst.msk [vmem:[%s761 + $0x99] sm:$0xff] %vm705, %v686
      %776 = vst.msk [vmem:[%s761 + $0xa9] sm:$0xff] %vm705, %v687
      %777 = vst.msk [vmem:[%s761 + $0xb1] sm:$0xff] %vm705, %v688
      %778 = vst.msk [vmem:[%s761 + $0xc1] sm:$0xff] %vm705, %v689
      %779 = vst.msk [vmem:[%s761 + $0xc9] sm:$0xff] %vm705, %v690
      %780 = vst.msk [vmem:[%s761 + $0xd9] sm:$0xff] %vm705, %v691
      %781 = vst.msk [vmem:[%s761 + $0xe1] sm:$0xff] %vm705, %v692
      %782 = vst.msk [vmem:[%s761 + $0xf1] sm:$0xff] %vm705, %v693
      %783 = vst.msk [vmem:[%s761 + $0xf9] sm:$0xff] %vm705, %v694
      %784 = vst.msk [vmem:[%s761 + $0x109] sm:$0xff] %vm705, %v695
      %785 = vst.msk [vmem:[%s761 + $0x111] sm:$0xff] %vm705, %v696
      %786 = vst.msk [vmem:[%s761 + $0x121] sm:$0xff] %vm705, %v697
      %787 = vst.msk [vmem:[%s761 + $0x129] sm:$0xff] %vm705, %v698
      %788 = vst.msk [vmem:[%s761 + $0x139] sm:$0xff] %vm705, %v699
      %789 = vst.msk [vmem:[%s761 + $0x141] sm:$0xff] %vm705, %v700
      %790 = vst.msk [vmem:[%s761 + $0x151] sm:$0xff] %vm705, %v701
      %791 = vst.msk [vmem:[%s761 + $0x159] sm:$0xff] %vm705, %v702
      %792 = vst.msk [vmem:[%s761 + $0x169] sm:$0xff] %vm705, %v703
      %793 = vst.msk [vmem:[%s761 + $0x171] sm:$0xff] %vm705, %v704
      %v794 = vld [vmem:[%s3] sm:$0x7]
      %v795 = vld [vmem:[%s3 + $0x4] sm:$0x7]
      %v796 = vld [vmem:[%s3 + $0x8] sm:$0x7]
      %v797 = vld [vmem:[#allocation2] sm:$0xff]
      %v798 = vld [vmem:[#allocation2 + $0x8] sm:$0xff]
      %v799 = vld [vmem:[#allocation2 + $0x18] sm:$0xff]
      %v800 = vld [vmem:[#allocation2 + $0x20] sm:$0xff]
      %v801 = vld [vmem:[#allocation2 + $0x30] sm:$0xff]
      %v802 = vld [vmem:[#allocation2 + $0x38] sm:$0xff]
      %v803 = vld [vmem:[#allocation2 + $0x48] sm:$0xff]
      %v804 = vld [vmem:[#allocation2 + $0x50] sm:$0xff]
      %v805 = vld [vmem:[#allocation2 + $0x60] sm:$0xff]
      %v806 = vld [vmem:[#allocation2 + $0x68] sm:$0xff]
      %v807 = vld [vmem:[#allocation2 + $0x78] sm:$0xff]
      %v808 = vld [vmem:[#allocation2 + $0x80] sm:$0xff]
      %v809 = vld [vmem:[#allocation2 + $0x90] sm:$0xff]
      %v810 = vld [vmem:[#allocation2 + $0x98] sm:$0xff]
      %v811 = vld [vmem:[#allocation2 + $0xa8] sm:$0xff]
      %v812 = vld [vmem:[#allocation2 + $0xb0] sm:$0xff]
      %v813 = vld [vmem:[#allocation2 + $0xc0] sm:$0xff]
      %v814 = vld [vmem:[#allocation2 + $0xc8] sm:$0xff]
      %v815 = vld [vmem:[#allocation2 + $0xd8] sm:$0xff]
      %v816 = vld [vmem:[#allocation2 + $0xe0] sm:$0xff]
      %v817 = vld [vmem:[#allocation2 + $0xf0] sm:$0xff]
      %v818 = vld [vmem:[#allocation2 + $0xf8] sm:$0xff]
      %v819 = vld [vmem:[#allocation2 + $0x108] sm:$0xff]
      %v820 = vld [vmem:[#allocation2 + $0x110] sm:$0xff]
      %v821 = vld [vmem:[#allocation2 + $0x120] sm:$0xff]
      %v822 = vld [vmem:[#allocation2 + $0x128] sm:$0xff]
      %v823 = vld [vmem:[#allocation2 + $0x138] sm:$0xff]
      %v824 = vld [vmem:[#allocation2 + $0x140] sm:$0xff]
      %v825 = vld [vmem:[#allocation2 + $0x150] sm:$0xff]
      %v826 = vld [vmem:[#allocation2 + $0x158] sm:$0xff]
      %v827 = vld [vmem:[#allocation2 + $0x168] sm:$0xff]
      %v828 = vld [vmem:[#allocation2 + $0x170] sm:$0xff]
      %v829 = vlaneseq
      %v830 = vshrl.u32 %v829, 7
      %v831 = vsub.s32 0, %v830
      %v832 = vrot.slane %v794, %v831
      %v833 = vmul.f32 %v797, %v832
      %v834 = vmul.f32 %v798, %v832
      %v835 = vmul.f32 %v799, %v832
      %v836 = vmul.f32 %v800, %v832
      %v837 = vmul.f32 %v801, %v832
      %v838 = vmul.f32 %v802, %v832
      %v839 = vmul.f32 %v803, %v832
      %v840 = vmul.f32 %v804, %v832
      %v841 = vmul.f32 %v805, %v832
      %v842 = vmul.f32 %v806, %v832
      %v843 = vmul.f32 %v807, %v832
      %v844 = vmul.f32 %v808, %v832
      %v845 = vmul.f32 %v809, %v832
      %v846 = vmul.f32 %v810, %v832
      %v847 = vmul.f32 %v811, %v832
      %v848 = vmul.f32 %v812, %v832
      %v849 = vmul.f32 %v813, %v832
      %v850 = vmul.f32 %v814, %v832
      %v851 = vmul.f32 %v815, %v832
      %v852 = vmul.f32 %v816, %v832
      %v853 = vmul.f32 %v817, %v832
      %v854 = vmul.f32 %v818, %v832
      %v855 = vmul.f32 %v819, %v832
      %v856 = vmul.f32 %v820, %v832
      %v857 = vmul.f32 %v821, %v832
      %v858 = vmul.f32 %v822, %v832
      %v859 = vmul.f32 %v823, %v832
      %v860 = vmul.f32 %v824, %v832
      %v861 = vmul.f32 %v825, %v832
      %v862 = vmul.f32 %v826, %v832
      %v863 = vmul.f32 %v827, %v832
      %v864 = vmul.f32 %v828, %v832
      %v865 = vadd.f32 %v833, 0.0
      %v866 = vadd.f32 %v834, 0.0
      %v867 = vadd.f32 %v835, 0.0
      %v868 = vadd.f32 %v836, 0.0
      %v869 = vadd.f32 %v837, 0.0
      %v870 = vadd.f32 %v838, 0.0
      %v871 = vadd.f32 %v839, 0.0
      %v872 = vadd.f32 %v840, 0.0
      %v873 = vadd.f32 %v841, 0.0
      %v874 = vadd.f32 %v842, 0.0
      %v875 = vadd.f32 %v843, 0.0
      %v876 = vadd.f32 %v844, 0.0
      %v877 = vadd.f32 %v845, 0.0
      %v878 = vadd.f32 %v846, 0.0
      %v879 = vadd.f32 %v847, 0.0
      %v880 = vadd.f32 %v848, 0.0
      %v881 = vadd.f32 %v849, 0.0
      %v882 = vadd.f32 %v850, 0.0
      %v883 = vadd.f32 %v851, 0.0
      %v884 = vadd.f32 %v852, 0.0
      %v885 = vadd.f32 %v853, 0.0
      %v886 = vadd.f32 %v854, 0.0
      %v887 = vadd.f32 %v855, 0.0
      %v888 = vadd.f32 %v856, 0.0
      %v889 = vadd.f32 %v857, 0.0
      %v890 = vadd.f32 %v858, 0.0
      %v891 = vadd.f32 %v859, 0.0
      %v892 = vadd.f32 %v860, 0.0
      %v893 = vadd.f32 %v861, 0.0
      %v894 = vadd.f32 %v862, 0.0
      %v895 = vadd.f32 %v863, 0.0
      %v896 = vadd.f32 %v864, 0.0
      %v897 = vld [vmem:[#allocation2 + $0x1] sm:$0xff]
      %v898 = vld [vmem:[#allocation2 + $0x9] sm:$0xff]
      %v899 = vld [vmem:[#allocation2 + $0x19] sm:$0xff]
      %v900 = vld [vmem:[#allocation2 + $0x21] sm:$0xff]
      %v901 = vld [vmem:[#allocation2 + $0x31] sm:$0xff]
      %v902 = vld [vmem:[#allocation2 + $0x39] sm:$0xff]
      %v903 = vld [vmem:[#allocation2 + $0x49] sm:$0xff]
      %v904 = vld [vmem:[#allocation2 + $0x51] sm:$0xff]
      %v905 = vld [vmem:[#allocation2 + $0x61] sm:$0xff]
      %v906 = vld [vmem:[#allocation2 + $0x69] sm:$0xff]
      %v907 = vld [vmem:[#allocation2 + $0x79] sm:$0xff]
      %v908 = vld [vmem:[#allocation2 + $0x81] sm:$0xff]
      %v909 = vld [vmem:[#allocation2 + $0x91] sm:$0xff]
      %v910 = vld [vmem:[#allocation2 + $0x99] sm:$0xff]
      %v911 = vld [vmem:[#allocation2 + $0xa9] sm:$0xff]
      %v912 = vld [vmem:[#allocation2 + $0xb1] sm:$0xff]
      %v913 = vld [vmem:[#allocation2 + $0xc1] sm:$0xff]
      %v914 = vld [vmem:[#allocation2 + $0xc9] sm:$0xff]
      %v915 = vld [vmem:[#allocation2 + $0xd9] sm:$0xff]
      %v916 = vld [vmem:[#allocation2 + $0xe1] sm:$0xff]
      %v917 = vld [vmem:[#allocation2 + $0xf1] sm:$0xff]
      %v918 = vld [vmem:[#allocation2 + $0xf9] sm:$0xff]
      %v919 = vld [vmem:[#allocation2 + $0x109] sm:$0xff]
      %v920 = vld [vmem:[#allocation2 + $0x111] sm:$0xff]
      %v921 = vld [vmem:[#allocation2 + $0x121] sm:$0xff]
      %v922 = vld [vmem:[#allocation2 + $0x129] sm:$0xff]
      %v923 = vld [vmem:[#allocation2 + $0x139] sm:$0xff]
      %v924 = vld [vmem:[#allocation2 + $0x141] sm:$0xff]
      %v925 = vld [vmem:[#allocation2 + $0x151] sm:$0xff]
      %v926 = vld [vmem:[#allocation2 + $0x159] sm:$0xff]
      %v927 = vld [vmem:[#allocation2 + $0x169] sm:$0xff]
      %v928 = vld [vmem:[#allocation2 + $0x171] sm:$0xff]
      %v929 = vlaneseq
      %v930 = vshrl.u32 %v929, 7
      %v931 = vsub.s32 1, %v930
      %v932 = vrot.slane %v794, %v931
      %v933 = vmul.f32 %v897, %v932
      %v934 = vmul.f32 %v898, %v932
      %v935 = vmul.f32 %v899, %v932
      %v936 = vmul.f32 %v900, %v932
      %v937 = vmul.f32 %v901, %v932
      %v938 = vmul.f32 %v902, %v932
      %v939 = vmul.f32 %v903, %v932
      %v940 = vmul.f32 %v904, %v932
      %v941 = vmul.f32 %v905, %v932
      %v942 = vmul.f32 %v906, %v932
      %v943 = vmul.f32 %v907, %v932
      %v944 = vmul.f32 %v908, %v932
      %v945 = vmul.f32 %v909, %v932
      %v946 = vmul.f32 %v910, %v932
      %v947 = vmul.f32 %v911, %v932
      %v948 = vmul.f32 %v912, %v932
      %v949 = vmul.f32 %v913, %v932
      %v950 = vmul.f32 %v914, %v932
      %v951 = vmul.f32 %v915, %v932
      %v952 = vmul.f32 %v916, %v932
      %v953 = vmul.f32 %v917, %v932
      %v954 = vmul.f32 %v918, %v932
      %v955 = vmul.f32 %v919, %v932
      %v956 = vmul.f32 %v920, %v932
      %v957 = vmul.f32 %v921, %v932
      %v958 = vmul.f32 %v922, %v932
      %v959 = vmul.f32 %v923, %v932
      %v960 = vmul.f32 %v924, %v932
      %v961 = vmul.f32 %v925, %v932
      %v962 = vmul.f32 %v926, %v932
      %v963 = vmul.f32 %v927, %v932
      %v964 = vmul.f32 %v928, %v932
      %v965 = vadd.f32 %v865, %v933
      %v966 = vadd.f32 %v866, %v934
      %v967 = vadd.f32 %v867, %v935
      %v968 = vadd.f32 %v868, %v936
      %v969 = vadd.f32 %v869, %v937
      %v970 = vadd.f32 %v870, %v938
      %v971 = vadd.f32 %v871, %v939
      %v972 = vadd.f32 %v872, %v940
      %v973 = vadd.f32 %v873, %v941
      %v974 = vadd.f32 %v874, %v942
      %v975 = vadd.f32 %v875, %v943
      %v976 = vadd.f32 %v876, %v944
      %v977 = vadd.f32 %v877, %v945
      %v978 = vadd.f32 %v878, %v946
      %v979 = vadd.f32 %v879, %v947
      %v980 = vadd.f32 %v880, %v948
      %v981 = vadd.f32 %v881, %v949
      %v982 = vadd.f32 %v882, %v950
      %v983 = vadd.f32 %v883, %v951
      %v984 = vadd.f32 %v884, %v952
      %v985 = vadd.f32 %v885, %v953
      %v986 = vadd.f32 %v886, %v954
      %v987 = vadd.f32 %v887, %v955
      %v988 = vadd.f32 %v888, %v956
      %v989 = vadd.f32 %v889, %v957
      %v990 = vadd.f32 %v890, %v958
      %v991 = vadd.f32 %v891, %v959
      %v992 = vadd.f32 %v892, %v960
      %v993 = vadd.f32 %v893, %v961
      %v994 = vadd.f32 %v894, %v962
      %v995 = vadd.f32 %v895, %v963
      %v996 = vadd.f32 %v896, %v964
      %v997 = vld [vmem:[#allocation2 + $0x2] sm:$0xff]
      %v998 = vld [vmem:[#allocation2 + $0xa] sm:$0xff]
      %v999 = vld [vmem:[#allocation2 + $0x1a] sm:$0xff]
      %v1000 = vld [vmem:[#allocation2 + $0x22] sm:$0xff]
      %v1001 = vld [vmem:[#allocation2 + $0x32] sm:$0xff]
      %v1002 = vld [vmem:[#allocation2 + $0x3a] sm:$0xff]
      %v1003 = vld [vmem:[#allocation2 + $0x4a] sm:$0xff]
      %v1004 = vld [vmem:[#allocation2 + $0x52] sm:$0xff]
      %v1005 = vld [vmem:[#allocation2 + $0x62] sm:$0xff]
      %v1006 = vld [vmem:[#allocation2 + $0x6a] sm:$0xff]
      %v1007 = vld [vmem:[#allocation2 + $0x7a] sm:$0xff]
      %v1008 = vld [vmem:[#allocation2 + $0x82] sm:$0xff]
      %v1009 = vld [vmem:[#allocation2 + $0x92] sm:$0xff]
      %v1010 = vld [vmem:[#allocation2 + $0x9a] sm:$0xff]
      %v1011 = vld [vmem:[#allocation2 + $0xaa] sm:$0xff]
      %v1012 = vld [vmem:[#allocation2 + $0xb2] sm:$0xff]
      %v1013 = vld [vmem:[#allocation2 + $0xc2] sm:$0xff]
      %v1014 = vld [vmem:[#allocation2 + $0xca] sm:$0xff]
      %v1015 = vld [vmem:[#allocation2 + $0xda] sm:$0xff]
      %v1016 = vld [vmem:[#allocation2 + $0xe2] sm:$0xff]
      %v1017 = vld [vmem:[#allocation2 + $0xf2] sm:$0xff]
      %v1018 = vld [vmem:[#allocation2 + $0xfa] sm:$0xff]
      %v1019 = vld [vmem:[#allocation2 + $0x10a] sm:$0xff]
      %v1020 = vld [vmem:[#allocation2 + $0x112] sm:$0xff]
      %v1021 = vld [vmem:[#allocation2 + $0x122] sm:$0xff]
      %v1022 = vld [vmem:[#allocation2 + $0x12a] sm:$0xff]
      %v1023 = vld [vmem:[#allocation2 + $0x13a] sm:$0xff]
      %v1024 = vld [vmem:[#allocation2 + $0x142] sm:$0xff]
      %v1025 = vld [vmem:[#allocation2 + $0x152] sm:$0xff]
      %v1026 = vld [vmem:[#allocation2 + $0x15a] sm:$0xff]
      %v1027 = vld [vmem:[#allocation2 + $0x16a] sm:$0xff]
      %v1028 = vld [vmem:[#allocation2 + $0x172] sm:$0xff]
      %v1029 = vlaneseq
      %v1030 = vshrl.u32 %v1029, 7
      %v1031 = vsub.s32 2, %v1030
      %v1032 = vrot.slane %v794, %v1031
      %v1033 = vmul.f32 %v997, %v1032
      %v1034 = vmul.f32 %v998, %v1032
      %v1035 = vmul.f32 %v999, %v1032
      %v1036 = vmul.f32 %v1000, %v1032
      %v1037 = vmul.f32 %v1001, %v1032
      %v1038 = vmul.f32 %v1002, %v1032
      %v1039 = vmul.f32 %v1003, %v1032
      %v1040 = vmul.f32 %v1004, %v1032
      %v1041 = vmul.f32 %v1005, %v1032
      %v1042 = vmul.f32 %v1006, %v1032
      %v1043 = vmul.f32 %v1007, %v1032
      %v1044 = vmul.f32 %v1008, %v1032
      %v1045 = vmul.f32 %v1009, %v1032
      %v1046 = vmul.f32 %v1010, %v1032
      %v1047 = vmul.f32 %v1011, %v1032
      %v1048 = vmul.f32 %v1012, %v1032
      %v1049 = vmul.f32 %v1013, %v1032
      %v1050 = vmul.f32 %v1014, %v1032
      %v1051 = vmul.f32 %v1015, %v1032
      %v1052 = vmul.f32 %v1016, %v1032
      %v1053 = vmul.f32 %v1017, %v1032
      %v1054 = vmul.f32 %v1018, %v1032
      %v1055 = vmul.f32 %v1019, %v1032
      %v1056 = vmul.f32 %v1020, %v1032
      %v1057 = vmul.f32 %v1021, %v1032
      %v1058 = vmul.f32 %v1022, %v1032
      %v1059 = vmul.f32 %v1023, %v1032
      %v1060 = vmul.f32 %v1024, %v1032
      %v1061 = vmul.f32 %v1025, %v1032
      %v1062 = vmul.f32 %v1026, %v1032
      %v1063 = vmul.f32 %v1027, %v1032
      %v1064 = vmul.f32 %v1028, %v1032
      %v1065 = vadd.f32 %v965, %v1033
      %v1066 = vadd.f32 %v966, %v1034
      %v1067 = vadd.f32 %v967, %v1035
      %v1068 = vadd.f32 %v968, %v1036
      %v1069 = vadd.f32 %v969, %v1037
      %v1070 = vadd.f32 %v970, %v1038
      %v1071 = vadd.f32 %v971, %v1039
      %v1072 = vadd.f32 %v972, %v1040
      %v1073 = vadd.f32 %v973, %v1041
      %v1074 = vadd.f32 %v974, %v1042
      %v1075 = vadd.f32 %v975, %v1043
      %v1076 = vadd.f32 %v976, %v1044
      %v1077 = vadd.f32 %v977, %v1045
      %v1078 = vadd.f32 %v978, %v1046
      %v1079 = vadd.f32 %v979, %v1047
      %v1080 = vadd.f32 %v980, %v1048
      %v1081 = vadd.f32 %v981, %v1049
      %v1082 = vadd.f32 %v982, %v1050
      %v1083 = vadd.f32 %v983, %v1051
      %v1084 = vadd.f32 %v984, %v1052
      %v1085 = vadd.f32 %v985, %v1053
      %v1086 = vadd.f32 %v986, %v1054
      %v1087 = vadd.f32 %v987, %v1055
      %v1088 = vadd.f32 %v988, %v1056
      %v1089 = vadd.f32 %v989, %v1057
      %v1090 = vadd.f32 %v990, %v1058
      %v1091 = vadd.f32 %v991, %v1059
      %v1092 = vadd.f32 %v992, %v1060
      %v1093 = vadd.f32 %v993, %v1061
      %v1094 = vadd.f32 %v994, %v1062
      %v1095 = vadd.f32 %v995, %v1063
      %v1096 = vadd.f32 %v996, %v1064
      %v1097 = vld [vmem:[%s761] sm:$0xff]
      %v1098 = vld [vmem:[%s761 + $0x8] sm:$0xff]
      %v1099 = vld [vmem:[%s761 + $0x18] sm:$0xff]
      %v1100 = vld [vmem:[%s761 + $0x20] sm:$0xff]
      %v1101 = vld [vmem:[%s761 + $0x30] sm:$0xff]
      %v1102 = vld [vmem:[%s761 + $0x38] sm:$0xff]
      %v1103 = vld [vmem:[%s761 + $0x48] sm:$0xff]
      %v1104 = vld [vmem:[%s761 + $0x50] sm:$0xff]
      %v1105 = vld [vmem:[%s761 + $0x60] sm:$0xff]
      %v1106 = vld [vmem:[%s761 + $0x68] sm:$0xff]
      %v1107 = vld [vmem:[%s761 + $0x78] sm:$0xff]
      %v1108 = vld [vmem:[%s761 + $0x80] sm:$0xff]
      %v1109 = vld [vmem:[%s761 + $0x90] sm:$0xff]
      %v1110 = vld [vmem:[%s761 + $0x98] sm:$0xff]
      %v1111 = vld [vmem:[%s761 + $0xa8] sm:$0xff]
      %v1112 = vld [vmem:[%s761 + $0xb0] sm:$0xff]
      %v1113 = vld [vmem:[%s761 + $0xc0] sm:$0xff]
      %v1114 = vld [vmem:[%s761 + $0xc8] sm:$0xff]
      %v1115 = vld [vmem:[%s761 + $0xd8] sm:$0xff]
      %v1116 = vld [vmem:[%s761 + $0xe0] sm:$0xff]
      %v1117 = vld [vmem:[%s761 + $0xf0] sm:$0xff]
      %v1118 = vld [vmem:[%s761 + $0xf8] sm:$0xff]
      %v1119 = vld [vmem:[%s761 + $0x108] sm:$0xff]
      %v1120 = vld [vmem:[%s761 + $0x110] sm:$0xff]
      %v1121 = vld [vmem:[%s761 + $0x120] sm:$0xff]
      %v1122 = vld [vmem:[%s761 + $0x128] sm:$0xff]
      %v1123 = vld [vmem:[%s761 + $0x138] sm:$0xff]
      %v1124 = vld [vmem:[%s761 + $0x140] sm:$0xff]
      %v1125 = vld [vmem:[%s761 + $0x150] sm:$0xff]
      %v1126 = vld [vmem:[%s761 + $0x158] sm:$0xff]
      %v1127 = vld [vmem:[%s761 + $0x168] sm:$0xff]
      %v1128 = vld [vmem:[%s761 + $0x170] sm:$0xff]
      %v1129 = vlaneseq
      %v1130 = vshrl.u32 %v1129, 7
      %v1131 = vsub.s32 0, %v1130
      %v1132 = vrot.slane %v795, %v1131
      %v1133 = vmul.f32 %v1097, %v1132
      %v1134 = vmul.f32 %v1098, %v1132
      %v1135 = vmul.f32 %v1099, %v1132
      %v1136 = vmul.f32 %v1100, %v1132
      %v1137 = vmul.f32 %v1101, %v1132
      %v1138 = vmul.f32 %v1102, %v1132
      %v1139 = vmul.f32 %v1103, %v1132
      %v1140 = vmul.f32 %v1104, %v1132
      %v1141 = vmul.f32 %v1105, %v1132
      %v1142 = vmul.f32 %v1106, %v1132
      %v1143 = vmul.f32 %v1107, %v1132
      %v1144 = vmul.f32 %v1108, %v1132
      %v1145 = vmul.f32 %v1109, %v1132
      %v1146 = vmul.f32 %v1110, %v1132
      %v1147 = vmul.f32 %v1111, %v1132
      %v1148 = vmul.f32 %v1112, %v1132
      %v1149 = vmul.f32 %v1113, %v1132
      %v1150 = vmul.f32 %v1114, %v1132
      %v1151 = vmul.f32 %v1115, %v1132
      %v1152 = vmul.f32 %v1116, %v1132
      %v1153 = vmul.f32 %v1117, %v1132
      %v1154 = vmul.f32 %v1118, %v1132
      %v1155 = vmul.f32 %v1119, %v1132
      %v1156 = vmul.f32 %v1120, %v1132
      %v1157 = vmul.f32 %v1121, %v1132
      %v1158 = vmul.f32 %v1122, %v1132
      %v1159 = vmul.f32 %v1123, %v1132
      %v1160 = vmul.f32 %v1124, %v1132
      %v1161 = vmul.f32 %v1125, %v1132
      %v1162 = vmul.f32 %v1126, %v1132
      %v1163 = vmul.f32 %v1127, %v1132
      %v1164 = vmul.f32 %v1128, %v1132
      %v1165 = vadd.f32 %v1065, %v1133
      %v1166 = vadd.f32 %v1066, %v1134
      %v1167 = vadd.f32 %v1067, %v1135
      %v1168 = vadd.f32 %v1068, %v1136
      %v1169 = vadd.f32 %v1069, %v1137
      %v1170 = vadd.f32 %v1070, %v1138
      %v1171 = vadd.f32 %v1071, %v1139
      %v1172 = vadd.f32 %v1072, %v1140
      %v1173 = vadd.f32 %v1073, %v1141
      %v1174 = vadd.f32 %v1074, %v1142
      %v1175 = vadd.f32 %v1075, %v1143
      %v1176 = vadd.f32 %v1076, %v1144
      %v1177 = vadd.f32 %v1077, %v1145
      %v1178 = vadd.f32 %v1078, %v1146
      %v1179 = vadd.f32 %v1079, %v1147
      %v1180 = vadd.f32 %v1080, %v1148
      %v1181 = vadd.f32 %v1081, %v1149
      %v1182 = vadd.f32 %v1082, %v1150
      %v1183 = vadd.f32 %v1083, %v1151
      %v1184 = vadd.f32 %v1084, %v1152
      %v1185 = vadd.f32 %v1085, %v1153
      %v1186 = vadd.f32 %v1086, %v1154
      %v1187 = vadd.f32 %v1087, %v1155
      %v1188 = vadd.f32 %v1088, %v1156
      %v1189 = vadd.f32 %v1089, %v1157
      %v1190 = vadd.f32 %v1090, %v1158
      %v1191 = vadd.f32 %v1091, %v1159
      %v1192 = vadd.f32 %v1092, %v1160
      %v1193 = vadd.f32 %v1093, %v1161
      %v1194 = vadd.f32 %v1094, %v1162
      %v1195 = vadd.f32 %v1095, %v1163
      %v1196 = vadd.f32 %v1096, %v1164
      %v1197 = vld [vmem:[%s761 + $0x1] sm:$0xff]
      %v1198 = vld [vmem:[%s761 + $0x9] sm:$0xff]
      %v1199 = vld [vmem:[%s761 + $0x19] sm:$0xff]
      %v1200 = vld [vmem:[%s761 + $0x21] sm:$0xff]
      %v1201 = vld [vmem:[%s761 + $0x31] sm:$0xff]
      %v1202 = vld [vmem:[%s761 + $0x39] sm:$0xff]
      %v1203 = vld [vmem:[%s761 + $0x49] sm:$0xff]
      %v1204 = vld [vmem:[%s761 + $0x51] sm:$0xff]
      %v1205 = vld [vmem:[%s761 + $0x61] sm:$0xff]
      %v1206 = vld [vmem:[%s761 + $0x69] sm:$0xff]
      %v1207 = vld [vmem:[%s761 + $0x79] sm:$0xff]
      %v1208 = vld [vmem:[%s761 + $0x81] sm:$0xff]
      %v1209 = vld [vmem:[%s761 + $0x91] sm:$0xff]
      %v1210 = vld [vmem:[%s761 + $0x99] sm:$0xff]
      %v1211 = vld [vmem:[%s761 + $0xa9] sm:$0xff]
      %v1212 = vld [vmem:[%s761 + $0xb1] sm:$0xff]
      %v1213 = vld [vmem:[%s761 + $0xc1] sm:$0xff]
      %v1214 = vld [vmem:[%s761 + $0xc9] sm:$0xff]
      %v1215 = vld [vmem:[%s761 + $0xd9] sm:$0xff]
      %v1216 = vld [vmem:[%s761 + $0xe1] sm:$0xff]
      %v1217 = vld [vmem:[%s761 + $0xf1] sm:$0xff]
      %v1218 = vld [vmem:[%s761 + $0xf9] sm:$0xff]
      %v1219 = vld [vmem:[%s761 + $0x109] sm:$0xff]
      %v1220 = vld [vmem:[%s761 + $0x111] sm:$0xff]
      %v1221 = vld [vmem:[%s761 + $0x121] sm:$0xff]
      %v1222 = vld [vmem:[%s761 + $0x129] sm:$0xff]
      %v1223 = vld [vmem:[%s761 + $0x139] sm:$0xff]
      %v1224 = vld [vmem:[%s761 + $0x141] sm:$0xff]
      %v1225 = vld [vmem:[%s761 + $0x151] sm:$0xff]
      %v1226 = vld [vmem:[%s761 + $0x159] sm:$0xff]
      %v1227 = vld [vmem:[%s761 + $0x169] sm:$0xff]
      %v1228 = vld [vmem:[%s761 + $0x171] sm:$0xff]
      %v1229 = vlaneseq
      %v1230 = vshrl.u32 %v1229, 7
      %v1231 = vsub.s32 1, %v1230
      %v1232 = vrot.slane %v795, %v1231
      %v1233 = vmul.f32 %v1197, %v1232
      %v1234 = vmul.f32 %v1198, %v1232
      %v1235 = vmul.f32 %v1199, %v1232
      %v1236 = vmul.f32 %v1200, %v1232
      %v1237 = vmul.f32 %v1201, %v1232
      %v1238 = vmul.f32 %v1202, %v1232
      %v1239 = vmul.f32 %v1203, %v1232
      %v1240 = vmul.f32 %v1204, %v1232
      %v1241 = vmul.f32 %v1205, %v1232
      %v1242 = vmul.f32 %v1206, %v1232
      %v1243 = vmul.f32 %v1207, %v1232
      %v1244 = vmul.f32 %v1208, %v1232
      %v1245 = vmul.f32 %v1209, %v1232
      %v1246 = vmul.f32 %v1210, %v1232
      %v1247 = vmul.f32 %v1211, %v1232
      %v1248 = vmul.f32 %v1212, %v1232
      %v1249 = vmul.f32 %v1213, %v1232
      %v1250 = vmul.f32 %v1214, %v1232
      %v1251 = vmul.f32 %v1215, %v1232
      %v1252 = vmul.f32 %v1216, %v1232
      %v1253 = vmul.f32 %v1217, %v1232
      %v1254 = vmul.f32 %v1218, %v1232
      %v1255 = vmul.f32 %v1219, %v1232
      %v1256 = vmul.f32 %v1220, %v1232
      %v1257 = vmul.f32 %v1221, %v1232
      %v1258 = vmul.f32 %v1222, %v1232
      %v1259 = vmul.f32 %v1223, %v1232
      %v1260 = vmul.f32 %v1224, %v1232
      %v1261 = vmul.f32 %v1225, %v1232
      %v1262 = vmul.f32 %v1226, %v1232
      %v1263 = vmul.f32 %v1227, %v1232
      %v1264 = vmul.f32 %v1228, %v1232
      %v1265 = vadd.f32 %v1165, %v1233
      %v1266 = vadd.f32 %v1166, %v1234
      %v1267 = vadd.f32 %v1167, %v1235
      %v1268 = vadd.f32 %v1168, %v1236
      %v1269 = vadd.f32 %v1169, %v1237
      %v1270 = vadd.f32 %v1170, %v1238
      %v1271 = vadd.f32 %v1171, %v1239
      %v1272 = vadd.f32 %v1172, %v1240
      %v1273 = vadd.f32 %v1173, %v1241
      %v1274 = vadd.f32 %v1174, %v1242
      %v1275 = vadd.f32 %v1175, %v1243
      %v1276 = vadd.f32 %v1176, %v1244
      %v1277 = vadd.f32 %v1177, %v1245
      %v1278 = vadd.f32 %v1178, %v1246
      %v1279 = vadd.f32 %v1179, %v1247
      %v1280 = vadd.f32 %v1180, %v1248
      %v1281 = vadd.f32 %v1181, %v1249
      %v1282 = vadd.f32 %v1182, %v1250
      %v1283 = vadd.f32 %v1183, %v1251
      %v1284 = vadd.f32 %v1184, %v1252
      %v1285 = vadd.f32 %v1185, %v1253
      %v1286 = vadd.f32 %v1186, %v1254
      %v1287 = vadd.f32 %v1187, %v1255
      %v1288 = vadd.f32 %v1188, %v1256
      %v1289 = vadd.f32 %v1189, %v1257
      %v1290 = vadd.f32 %v1190, %v1258
      %v1291 = vadd.f32 %v1191, %v1259
      %v1292 = vadd.f32 %v1192, %v1260
      %v1293 = vadd.f32 %v1193, %v1261
      %v1294 = vadd.f32 %v1194, %v1262
      %v1295 = vadd.f32 %v1195, %v1263
      %v1296 = vadd.f32 %v1196, %v1264
      %v1297 = vld [vmem:[%s761 + $0x2] sm:$0xff]
      %v1298 = vld [vmem:[%s761 + $0xa] sm:$0xff]
      %v1299 = vld [vmem:[%s761 + $0x1a] sm:$0xff]
      %v1300 = vld [vmem:[%s761 + $0x22] sm:$0xff]
      %v1301 = vld [vmem:[%s761 + $0x32] sm:$0xff]
      %v1302 = vld [vmem:[%s761 + $0x3a] sm:$0xff]
      %v1303 = vld [vmem:[%s761 + $0x4a] sm:$0xff]
      %v1304 = vld [vmem:[%s761 + $0x52] sm:$0xff]
      %v1305 = vld [vmem:[%s761 + $0x62] sm:$0xff]
      %v1306 = vld [vmem:[%s761 + $0x6a] sm:$0xff]
      %v1307 = vld [vmem:[%s761 + $0x7a] sm:$0xff]
      %v1308 = vld [vmem:[%s761 + $0x82] sm:$0xff]
      %v1309 = vld [vmem:[%s761 + $0x92] sm:$0xff]
      %v1310 = vld [vmem:[%s761 + $0x9a] sm:$0xff]
      %v1311 = vld [vmem:[%s761 + $0xaa] sm:$0xff]
      %v1312 = vld [vmem:[%s761 + $0xb2] sm:$0xff]
      %v1313 = vld [vmem:[%s761 + $0xc2] sm:$0xff]
      %v1314 = vld [vmem:[%s761 + $0xca] sm:$0xff]
      %v1315 = vld [vmem:[%s761 + $0xda] sm:$0xff]
      %v1316 = vld [vmem:[%s761 + $0xe2] sm:$0xff]
      %v1317 = vld [vmem:[%s761 + $0xf2] sm:$0xff]
      %v1318 = vld [vmem:[%s761 + $0xfa] sm:$0xff]
      %v1319 = vld [vmem:[%s761 + $0x10a] sm:$0xff]
      %v1320 = vld [vmem:[%s761 + $0x112] sm:$0xff]
      %v1321 = vld [vmem:[%s761 + $0x122] sm:$0xff]
      %v1322 = vld [vmem:[%s761 + $0x12a] sm:$0xff]
      %v1323 = vld [vmem:[%s761 + $0x13a] sm:$0xff]
      %v1324 = vld [vmem:[%s761 + $0x142] sm:$0xff]
      %v1325 = vld [vmem:[%s761 + $0x152] sm:$0xff]
      %v1326 = vld [vmem:[%s761 + $0x15a] sm:$0xff]
      %v1327 = vld [vmem:[%s761 + $0x16a] sm:$0xff]
      %v1328 = vld [vmem:[%s761 + $0x172] sm:$0xff]
      %v1329 = vlaneseq
      %v1330 = vshrl.u32 %v1329, 7
      %v1331 = vsub.s32 2, %v1330
      %v1332 = vrot.slane %v795, %v1331
      %v1333 = vmul.f32 %v1297, %v1332
      %v1334 = vmul.f32 %v1298, %v1332
      %v1335 = vmul.f32 %v1299, %v1332
      %v1336 = vmul.f32 %v1300, %v1332
      %v1337 = vmul.f32 %v1301, %v1332
      %v1338 = vmul.f32 %v1302, %v1332
      %v1339 = vmul.f32 %v1303, %v1332
      %v1340 = vmul.f32 %v1304, %v1332
      %v1341 = vmul.f32 %v1305, %v1332
      %v1342 = vmul.f32 %v1306, %v1332
      %v1343 = vmul.f32 %v1307, %v1332
      %v1344 = vmul.f32 %v1308, %v1332
      %v1345 = vmul.f32 %v1309, %v1332
      %v1346 = vmul.f32 %v1310, %v1332
      %v1347 = vmul.f32 %v1311, %v1332
      %v1348 = vmul.f32 %v1312, %v1332
      %v1349 = vmul.f32 %v1313, %v1332
      %v1350 = vmul.f32 %v1314, %v1332
      %v1351 = vmul.f32 %v1315, %v1332
      %v1352 = vmul.f32 %v1316, %v1332
      %v1353 = vmul.f32 %v1317, %v1332
      %v1354 = vmul.f32 %v1318, %v1332
      %v1355 = vmul.f32 %v1319, %v1332
      %v1356 = vmul.f32 %v1320, %v1332
      %v1357 = vmul.f32 %v1321, %v1332
      %v1358 = vmul.f32 %v1322, %v1332
      %v1359 = vmul.f32 %v1323, %v1332
      %v1360 = vmul.f32 %v1324, %v1332
      %v1361 = vmul.f32 %v1325, %v1332
      %v1362 = vmul.f32 %v1326, %v1332
      %v1363 = vmul.f32 %v1327, %v1332
      %v1364 = vmul.f32 %v1328, %v1332
      %v1365 = vadd.f32 %v1265, %v1333
      %v1366 = vadd.f32 %v1266, %v1334
      %v1367 = vadd.f32 %v1267, %v1335
      %v1368 = vadd.f32 %v1268, %v1336
      %v1369 = vadd.f32 %v1269, %v1337
      %v1370 = vadd.f32 %v1270, %v1338
      %v1371 = vadd.f32 %v1271, %v1339
      %v1372 = vadd.f32 %v1272, %v1340
      %v1373 = vadd.f32 %v1273, %v1341
      %v1374 = vadd.f32 %v1274, %v1342
      %v1375 = vadd.f32 %v1275, %v1343
      %v1376 = vadd.f32 %v1276, %v1344
      %v1377 = vadd.f32 %v1277, %v1345
      %v1378 = vadd.f32 %v1278, %v1346
      %v1379 = vadd.f32 %v1279, %v1347
      %v1380 = vadd.f32 %v1280, %v1348
      %v1381 = vadd.f32 %v1281, %v1349
      %v1382 = vadd.f32 %v1282, %v1350
      %v1383 = vadd.f32 %v1283, %v1351
      %v1384 = vadd.f32 %v1284, %v1352
      %v1385 = vadd.f32 %v1285, %v1353
      %v1386 = vadd.f32 %v1286, %v1354
      %v1387 = vadd.f32 %v1287, %v1355
      %v1388 = vadd.f32 %v1288, %v1356
      %v1389 = vadd.f32 %v1289, %v1357
      %v1390 = vadd.f32 %v1290, %v1358
      %v1391 = vadd.f32 %v1291, %v1359
      %v1392 = vadd.f32 %v1292, %v1360
      %v1393 = vadd.f32 %v1293, %v1361
      %v1394 = vadd.f32 %v1294, %v1362
      %v1395 = vadd.f32 %v1295, %v1363
      %v1396 = vadd.f32 %v1296, %v1364
      %s1397 = scalar_lea.vmem [#allocation2], 48
      %v1398 = vld [vmem:[%s1397] sm:$0xff]
      %v1399 = vld [vmem:[%s1397 + $0x8] sm:$0xff]
      %v1400 = vld [vmem:[%s1397 + $0x18] sm:$0xff]
      %v1401 = vld [vmem:[%s1397 + $0x20] sm:$0xff]
      %v1402 = vld [vmem:[%s1397 + $0x30] sm:$0xff]
      %v1403 = vld [vmem:[%s1397 + $0x38] sm:$0xff]
      %v1404 = vld [vmem:[%s1397 + $0x48] sm:$0xff]
      %v1405 = vld [vmem:[%s1397 + $0x50] sm:$0xff]
      %v1406 = vld [vmem:[%s1397 + $0x60] sm:$0xff]
      %v1407 = vld [vmem:[%s1397 + $0x68] sm:$0xff]
      %v1408 = vld [vmem:[%s1397 + $0x78] sm:$0xff]
      %v1409 = vld [vmem:[%s1397 + $0x80] sm:$0xff]
      %v1410 = vld [vmem:[%s1397 + $0x90] sm:$0xff]
      %v1411 = vld [vmem:[%s1397 + $0x98] sm:$0xff]
      %v1412 = vld [vmem:[%s1397 + $0xa8] sm:$0xff]
      %v1413 = vld [vmem:[%s1397 + $0xb0] sm:$0xff]
      %v1414 = vld [vmem:[%s1397 + $0xc0] sm:$0xff]
      %v1415 = vld [vmem:[%s1397 + $0xc8] sm:$0xff]
      %v1416 = vld [vmem:[%s1397 + $0xd8] sm:$0xff]
      %v1417 = vld [vmem:[%s1397 + $0xe0] sm:$0xff]
      %v1418 = vld [vmem:[%s1397 + $0xf0] sm:$0xff]
      %v1419 = vld [vmem:[%s1397 + $0xf8] sm:$0xff]
      %v1420 = vld [vmem:[%s1397 + $0x108] sm:$0xff]
      %v1421 = vld [vmem:[%s1397 + $0x110] sm:$0xff]
      %v1422 = vld [vmem:[%s1397 + $0x120] sm:$0xff]
      %v1423 = vld [vmem:[%s1397 + $0x128] sm:$0xff]
      %v1424 = vld [vmem:[%s1397 + $0x138] sm:$0xff]
      %v1425 = vld [vmem:[%s1397 + $0x140] sm:$0xff]
      %v1426 = vld [vmem:[%s1397 + $0x150] sm:$0xff]
      %v1427 = vld [vmem:[%s1397 + $0x158] sm:$0xff]
      %v1428 = vld [vmem:[%s1397 + $0x168] sm:$0xff]
      %v1429 = vld [vmem:[%s1397 + $0x170] sm:$0xff]
      %v1430 = vlaneseq
      %v1431 = vshrl.u32 %v1430, 7
      %v1432 = vsub.s32 0, %v1431
      %v1433 = vrot.slane %v796, %v1432
      %v1434 = vmul.f32 %v1398, %v1433
      %v1435 = vmul.f32 %v1399, %v1433
      %v1436 = vmul.f32 %v1400, %v1433
      %v1437 = vmul.f32 %v1401, %v1433
      %v1438 = vmul.f32 %v1402, %v1433
      %v1439 = vmul.f32 %v1403, %v1433
      %v1440 = vmul.f32 %v1404, %v1433
      %v1441 = vmul.f32 %v1405, %v1433
      %v1442 = vmul.f32 %v1406, %v1433
      %v1443 = vmul.f32 %v1407, %v1433
      %v1444 = vmul.f32 %v1408, %v1433
      %v1445 = vmul.f32 %v1409, %v1433
      %v1446 = vmul.f32 %v1410, %v1433
      %v1447 = vmul.f32 %v1411, %v1433
      %v1448 = vmul.f32 %v1412, %v1433
      %v1449 = vmul.f32 %v1413, %v1433
      %v1450 = vmul.f32 %v1414, %v1433
      %v1451 = vmul.f32 %v1415, %v1433
      %v1452 = vmul.f32 %v1416, %v1433
      %v1453 = vmul.f32 %v1417, %v1433
      %v1454 = vmul.f32 %v1418, %v1433
      %v1455 = vmul.f32 %v1419, %v1433
      %v1456 = vmul.f32 %v1420, %v1433
      %v1457 = vmul.f32 %v1421, %v1433
      %v1458 = vmul.f32 %v1422, %v1433
      %v1459 = vmul.f32 %v1423, %v1433
      %v1460 = vmul.f32 %v1424, %v1433
      %v1461 = vmul.f32 %v1425, %v1433
      %v1462 = vmul.f32 %v1426, %v1433
      %v1463 = vmul.f32 %v1427, %v1433
      %v1464 = vmul.f32 %v1428, %v1433
      %v1465 = vmul.f32 %v1429, %v1433
      %v1466 = vadd.f32 %v1365, %v1434
      %v1467 = vadd.f32 %v1366, %v1435
      %v1468 = vadd.f32 %v1367, %v1436
      %v1469 = vadd.f32 %v1368, %v1437
      %v1470 = vadd.f32 %v1369, %v1438
      %v1471 = vadd.f32 %v1370, %v1439
      %v1472 = vadd.f32 %v1371, %v1440
      %v1473 = vadd.f32 %v1372, %v1441
      %v1474 = vadd.f32 %v1373, %v1442
      %v1475 = vadd.f32 %v1374, %v1443
      %v1476 = vadd.f32 %v1375, %v1444
      %v1477 = vadd.f32 %v1376, %v1445
      %v1478 = vadd.f32 %v1377, %v1446
      %v1479 = vadd.f32 %v1378, %v1447
      %v1480 = vadd.f32 %v1379, %v1448
      %v1481 = vadd.f32 %v1380, %v1449
      %v1482 = vadd.f32 %v1381, %v1450
      %v1483 = vadd.f32 %v1382, %v1451
      %v1484 = vadd.f32 %v1383, %v1452
      %v1485 = vadd.f32 %v1384, %v1453
      %v1486 = vadd.f32 %v1385, %v1454
      %v1487 = vadd.f32 %v1386, %v1455
      %v1488 = vadd.f32 %v1387, %v1456
      %v1489 = vadd.f32 %v1388, %v1457
      %v1490 = vadd.f32 %v1389, %v1458
      %v1491 = vadd.f32 %v1390, %v1459
      %v1492 = vadd.f32 %v1391, %v1460
      %v1493 = vadd.f32 %v1392, %v1461
      %v1494 = vadd.f32 %v1393, %v1462
      %v1495 = vadd.f32 %v1394, %v1463
      %v1496 = vadd.f32 %v1395, %v1464
      %v1497 = vadd.f32 %v1396, %v1465
      %v1498 = vld [vmem:[%s1397 + $0x1] sm:$0xff]
      %v1499 = vld [vmem:[%s1397 + $0x9] sm:$0xff]
      %v1500 = vld [vmem:[%s1397 + $0x19] sm:$0xff]
      %v1501 = vld [vmem:[%s1397 + $0x21] sm:$0xff]
      %v1502 = vld [vmem:[%s1397 + $0x31] sm:$0xff]
      %v1503 = vld [vmem:[%s1397 + $0x39] sm:$0xff]
      %v1504 = vld [vmem:[%s1397 + $0x49] sm:$0xff]
      %v1505 = vld [vmem:[%s1397 + $0x51] sm:$0xff]
      %v1506 = vld [vmem:[%s1397 + $0x61] sm:$0xff]
      %v1507 = vld [vmem:[%s1397 + $0x69] sm:$0xff]
      %v1508 = vld [vmem:[%s1397 + $0x79] sm:$0xff]
      %v1509 = vld [vmem:[%s1397 + $0x81] sm:$0xff]
      %v1510 = vld [vmem:[%s1397 + $0x91] sm:$0xff]
      %v1511 = vld [vmem:[%s1397 + $0x99] sm:$0xff]
      %v1512 = vld [vmem:[%s1397 + $0xa9] sm:$0xff]
      %v1513 = vld [vmem:[%s1397 + $0xb1] sm:$0xff]
      %v1514 = vld [vmem:[%s1397 + $0xc1] sm:$0xff]
      %v1515 = vld [vmem:[%s1397 + $0xc9] sm:$0xff]
      %v1516 = vld [vmem:[%s1397 + $0xd9] sm:$0xff]
      %v1517 = vld [vmem:[%s1397 + $0xe1] sm:$0xff]
      %v1518 = vld [vmem:[%s1397 + $0xf1] sm:$0xff]
      %v1519 = vld [vmem:[%s1397 + $0xf9] sm:$0xff]
      %v1520 = vld [vmem:[%s1397 + $0x109] sm:$0xff]
      %v1521 = vld [vmem:[%s1397 + $0x111] sm:$0xff]
      %v1522 = vld [vmem:[%s1397 + $0x121] sm:$0xff]
      %v1523 = vld [vmem:[%s1397 + $0x129] sm:$0xff]
      %v1524 = vld [vmem:[%s1397 + $0x139] sm:$0xff]
      %v1525 = vld [vmem:[%s1397 + $0x141] sm:$0xff]
      %v1526 = vld [vmem:[%s1397 + $0x151] sm:$0xff]
      %v1527 = vld [vmem:[%s1397 + $0x159] sm:$0xff]
      %v1528 = vld [vmem:[%s1397 + $0x169] sm:$0xff]
      %v1529 = vld [vmem:[%s1397 + $0x171] sm:$0xff]
      %v1530 = vlaneseq
      %v1531 = vshrl.u32 %v1530, 7
      %v1532 = vsub.s32 1, %v1531
      %v1533 = vrot.slane %v796, %v1532
      %v1534 = vmul.f32 %v1498, %v1533
      %v1535 = vmul.f32 %v1499, %v1533
      %v1536 = vmul.f32 %v1500, %v1533
      %v1537 = vmul.f32 %v1501, %v1533
      %v1538 = vmul.f32 %v1502, %v1533
      %v1539 = vmul.f32 %v1503, %v1533
      %v1540 = vmul.f32 %v1504, %v1533
      %v1541 = vmul.f32 %v1505, %v1533
      %v1542 = vmul.f32 %v1506, %v1533
      %v1543 = vmul.f32 %v1507, %v1533
      %v1544 = vmul.f32 %v1508, %v1533
      %v1545 = vmul.f32 %v1509, %v1533
      %v1546 = vmul.f32 %v1510, %v1533
      %v1547 = vmul.f32 %v1511, %v1533
      %v1548 = vmul.f32 %v1512, %v1533
      %v1549 = vmul.f32 %v1513, %v1533
      %v1550 = vmul.f32 %v1514, %v1533
      %v1551 = vmul.f32 %v1515, %v1533
      %v1552 = vmul.f32 %v1516, %v1533
      %v1553 = vmul.f32 %v1517, %v1533
      %v1554 = vmul.f32 %v1518, %v1533
      %v1555 = vmul.f32 %v1519, %v1533
      %v1556 = vmul.f32 %v1520, %v1533
      %v1557 = vmul.f32 %v1521, %v1533
      %v1558 = vmul.f32 %v1522, %v1533
      %v1559 = vmul.f32 %v1523, %v1533
      %v1560 = vmul.f32 %v1524, %v1533
      %v1561 = vmul.f32 %v1525, %v1533
      %v1562 = vmul.f32 %v1526, %v1533
      %v1563 = vmul.f32 %v1527, %v1533
      %v1564 = vmul.f32 %v1528, %v1533
      %v1565 = vmul.f32 %v1529, %v1533
      %v1566 = vadd.f32 %v1466, %v1534
      %v1567 = vadd.f32 %v1467, %v1535
      %v1568 = vadd.f32 %v1468, %v1536
      %v1569 = vadd.f32 %v1469, %v1537
      %v1570 = vadd.f32 %v1470, %v1538
      %v1571 = vadd.f32 %v1471, %v1539
      %v1572 = vadd.f32 %v1472, %v1540
      %v1573 = vadd.f32 %v1473, %v1541
      %v1574 = vadd.f32 %v1474, %v1542
      %v1575 = vadd.f32 %v1475, %v1543
      %v1576 = vadd.f32 %v1476, %v1544
      %v1577 = vadd.f32 %v1477, %v1545
      %v1578 = vadd.f32 %v1478, %v1546
      %v1579 = vadd.f32 %v1479, %v1547
      %v1580 = vadd.f32 %v1480, %v1548
      %v1581 = vadd.f32 %v1481, %v1549
      %v1582 = vadd.f32 %v1482, %v1550
      %v1583 = vadd.f32 %v1483, %v1551
      %v1584 = vadd.f32 %v1484, %v1552
      %v1585 = vadd.f32 %v1485, %v1553
      %v1586 = vadd.f32 %v1486, %v1554
      %v1587 = vadd.f32 %v1487, %v1555
      %v1588 = vadd.f32 %v1488, %v1556
      %v1589 = vadd.f32 %v1489, %v1557
      %v1590 = vadd.f32 %v1490, %v1558
      %v1591 = vadd.f32 %v1491, %v1559
      %v1592 = vadd.f32 %v1492, %v1560
      %v1593 = vadd.f32 %v1493, %v1561
      %v1594 = vadd.f32 %v1494, %v1562
      %v1595 = vadd.f32 %v1495, %v1563
      %v1596 = vadd.f32 %v1496, %v1564
      %v1597 = vadd.f32 %v1497, %v1565
      %v1598 = vld [vmem:[%s1397 + $0x2] sm:$0xff]
      %v1599 = vld [vmem:[%s1397 + $0xa] sm:$0xff]
      %v1600 = vld [vmem:[%s1397 + $0x1a] sm:$0xff]
      %v1601 = vld [vmem:[%s1397 + $0x22] sm:$0xff]
      %v1602 = vld [vmem:[%s1397 + $0x32] sm:$0xff]
      %v1603 = vld [vmem:[%s1397 + $0x3a] sm:$0xff]
      %v1604 = vld [vmem:[%s1397 + $0x4a] sm:$0xff]
      %v1605 = vld [vmem:[%s1397 + $0x52] sm:$0xff]
      %v1606 = vld [vmem:[%s1397 + $0x62] sm:$0xff]
      %v1607 = vld [vmem:[%s1397 + $0x6a] sm:$0xff]
      %v1608 = vld [vmem:[%s1397 + $0x7a] sm:$0xff]
      %v1609 = vld [vmem:[%s1397 + $0x82] sm:$0xff]
      %v1610 = vld [vmem:[%s1397 + $0x92] sm:$0xff]
      %v1611 = vld [vmem:[%s1397 + $0x9a] sm:$0xff]
      %v1612 = vld [vmem:[%s1397 + $0xaa] sm:$0xff]
      %v1613 = vld [vmem:[%s1397 + $0xb2] sm:$0xff]
      %v1614 = vld [vmem:[%s1397 + $0xc2] sm:$0xff]
      %v1615 = vld [vmem:[%s1397 + $0xca] sm:$0xff]
      %v1616 = vld [vmem:[%s1397 + $0xda] sm:$0xff]
      %v1617 = vld [vmem:[%s1397 + $0xe2] sm:$0xff]
      %v1618 = vld [vmem:[%s1397 + $0xf2] sm:$0xff]
      %v1619 = vld [vmem:[%s1397 + $0xfa] sm:$0xff]
      %v1620 = vld [vmem:[%s1397 + $0x10a] sm:$0xff]
      %v1621 = vld [vmem:[%s1397 + $0x112] sm:$0xff]
      %v1622 = vld [vmem:[%s1397 + $0x122] sm:$0xff]
      %v1623 = vld [vmem:[%s1397 + $0x12a] sm:$0xff]
      %v1624 = vld [vmem:[%s1397 + $0x13a] sm:$0xff]
      %v1625 = vld [vmem:[%s1397 + $0x142] sm:$0xff]
      %v1626 = vld [vmem:[%s1397 + $0x152] sm:$0xff]
      %v1627 = vld [vmem:[%s1397 + $0x15a] sm:$0xff]
      %v1628 = vld [vmem:[%s1397 + $0x16a] sm:$0xff]
      %v1629 = vld [vmem:[%s1397 + $0x172] sm:$0xff]
      %v1630 = vlaneseq
      %v1631 = vshrl.u32 %v1630, 7
      %v1632 = vsub.s32 2, %v1631
      %v1633 = vrot.slane %v796, %v1632
      %v1634 = vmul.f32 %v1598, %v1633
      %v1635 = vmul.f32 %v1599, %v1633
      %v1636 = vmul.f32 %v1600, %v1633
      %v1637 = vmul.f32 %v1601, %v1633
      %v1638 = vmul.f32 %v1602, %v1633
      %v1639 = vmul.f32 %v1603, %v1633
      %v1640 = vmul.f32 %v1604, %v1633
      %v1641 = vmul.f32 %v1605, %v1633
      %v1642 = vmul.f32 %v1606, %v1633
      %v1643 = vmul.f32 %v1607, %v1633
      %v1644 = vmul.f32 %v1608, %v1633
      %v1645 = vmul.f32 %v1609, %v1633
      %v1646 = vmul.f32 %v1610, %v1633
      %v1647 = vmul.f32 %v1611, %v1633
      %v1648 = vmul.f32 %v1612, %v1633
      %v1649 = vmul.f32 %v1613, %v1633
      %v1650 = vmul.f32 %v1614, %v1633
      %v1651 = vmul.f32 %v1615, %v1633
      %v1652 = vmul.f32 %v1616, %v1633
      %v1653 = vmul.f32 %v1617, %v1633
      %v1654 = vmul.f32 %v1618, %v1633
      %v1655 = vmul.f32 %v1619, %v1633
      %v1656 = vmul.f32 %v1620, %v1633
      %v1657 = vmul.f32 %v1621, %v1633
      %v1658 = vmul.f32 %v1622, %v1633
      %v1659 = vmul.f32 %v1623, %v1633
      %v1660 = vmul.f32 %v1624, %v1633
      %v1661 = vmul.f32 %v1625, %v1633
      %v1662 = vmul.f32 %v1626, %v1633
      %v1663 = vmul.f32 %v1627, %v1633
      %v1664 = vmul.f32 %v1628, %v1633
      %v1665 = vmul.f32 %v1629, %v1633
      %v1666 = vadd.f32 %v1566, %v1634
      %v1667 = vadd.f32 %v1567, %v1635
      %v1668 = vadd.f32 %v1568, %v1636
      %v1669 = vadd.f32 %v1569, %v1637
      %v1670 = vadd.f32 %v1570, %v1638
      %v1671 = vadd.f32 %v1571, %v1639
      %v1672 = vadd.f32 %v1572, %v1640
      %v1673 = vadd.f32 %v1573, %v1641
      %v1674 = vadd.f32 %v1574, %v1642
      %v1675 = vadd.f32 %v1575, %v1643
      %v1676 = vadd.f32 %v1576, %v1644
      %v1677 = vadd.f32 %v1577, %v1645
      %v1678 = vadd.f32 %v1578, %v1646
      %v1679 = vadd.f32 %v1579, %v1647
      %v1680 = vadd.f32 %v1580, %v1648
      %v1681 = vadd.f32 %v1581, %v1649
      %v1682 = vadd.f32 %v1582, %v1650
      %v1683 = vadd.f32 %v1583, %v1651
      %v1684 = vadd.f32 %v1584, %v1652
      %v1685 = vadd.f32 %v1585, %v1653
      %v1686 = vadd.f32 %v1586, %v1654
      %v1687 = vadd.f32 %v1587, %v1655
      %v1688 = vadd.f32 %v1588, %v1656
      %v1689 = vadd.f32 %v1589, %v1657
      %v1690 = vadd.f32 %v1590, %v1658
      %v1691 = vadd.f32 %v1591, %v1659
      %v1692 = vadd.f32 %v1592, %v1660
      %v1693 = vadd.f32 %v1593, %v1661
      %v1694 = vadd.f32 %v1594, %v1662
      %v1695 = vadd.f32 %v1595, %v1663
      %v1696 = vadd.f32 %v1596, %v1664
      %v1697 = vadd.f32 %v1597, %v1665
      %v1698 = vld [vmem:[%s4] sm:$0x1]
      %v1700 = vlaneseq
      %v1701 = vshrl.u32 %v1700, 7
      %v1702 = vsub.s32 0, %v1701
      %v1703 = vrot.slane %v1698, %v1702
      %v1705 = vadd.f32 %v1666, %v1703
      %v1706 = vadd.f32 %v1667, %v1703
      %v1707 = vadd.f32 %v1668, %v1703
      %v1708 = vadd.f32 %v1669, %v1703
      %v1709 = vadd.f32 %v1670, %v1703
      %v1710 = vadd.f32 %v1671, %v1703
      %v1711 = vadd.f32 %v1672, %v1703
      %v1712 = vadd.f32 %v1673, %v1703
      %v1713 = vadd.f32 %v1674, %v1703
      %v1714 = vadd.f32 %v1675, %v1703
      %v1715 = vadd.f32 %v1676, %v1703
      %v1716 = vadd.f32 %v1677, %v1703
      %v1717 = vadd.f32 %v1678, %v1703
      %v1718 = vadd.f32 %v1679, %v1703
      %v1719 = vadd.f32 %v1680, %v1703
      %v1720 = vadd.f32 %v1681, %v1703
      %v1721 = vadd.f32 %v1682, %v1703
      %v1722 = vadd.f32 %v1683, %v1703
      %v1723 = vadd.f32 %v1684, %v1703
      %v1724 = vadd.f32 %v1685, %v1703
      %v1725 = vadd.f32 %v1686, %v1703
      %v1726 = vadd.f32 %v1687, %v1703
      %v1727 = vadd.f32 %v1688, %v1703
      %v1728 = vadd.f32 %v1689, %v1703
      %v1729 = vadd.f32 %v1690, %v1703
      %v1730 = vadd.f32 %v1691, %v1703
      %v1731 = vadd.f32 %v1692, %v1703
      %v1732 = vadd.f32 %v1693, %v1703
      %v1733 = vadd.f32 %v1694, %v1703
      %v1734 = vadd.f32 %v1695, %v1703
      %v1735 = vadd.f32 %v1696, %v1703
      %v1736 = vadd.f32 %v1697, %v1703
      %v1737 = vmax.f32 %v1705, 0.0
      %v1738 = vmax.f32 %v1706, 0.0
      %v1739 = vmax.f32 %v1707, 0.0
      %v1740 = vmax.f32 %v1708, 0.0
      %v1741 = vmax.f32 %v1709, 0.0
      %v1742 = vmax.f32 %v1710, 0.0
      %v1743 = vmax.f32 %v1711, 0.0
      %v1744 = vmax.f32 %v1712, 0.0
      %v1745 = vmax.f32 %v1713, 0.0
      %v1746 = vmax.f32 %v1714, 0.0
      %v1747 = vmax.f32 %v1715, 0.0
      %v1748 = vmax.f32 %v1716, 0.0
      %v1749 = vmax.f32 %v1717, 0.0
      %v1750 = vmax.f32 %v1718, 0.0
      %v1751 = vmax.f32 %v1719, 0.0
      %v1752 = vmax.f32 %v1720, 0.0
      %v1753 = vmax.f32 %v1721, 0.0
      %v1754 = vmax.f32 %v1722, 0.0
      %v1755 = vmax.f32 %v1723, 0.0
      %v1756 = vmax.f32 %v1724, 0.0
      %v1757 = vmax.f32 %v1725, 0.0
      %v1758 = vmax.f32 %v1726, 0.0
      %v1759 = vmax.f32 %v1727, 0.0
      %v1760 = vmax.f32 %v1728, 0.0
      %v1761 = vmax.f32 %v1729, 0.0
      %v1762 = vmax.f32 %v1730, 0.0
      %v1763 = vmax.f32 %v1731, 0.0
      %v1764 = vmax.f32 %v1732, 0.0
      %v1765 = vmax.f32 %v1733, 0.0
      %v1766 = vmax.f32 %v1734, 0.0
      %v1767 = vmax.f32 %v1735, 0.0
      %v1768 = vmax.f32 %v1736, 0.0
      %v1769 = vmin.f32 %v1737, 6.0
      %v1770 = vmin.f32 %v1738, 6.0
      %v1771 = vmin.f32 %v1739, 6.0
      %v1772 = vmin.f32 %v1740, 6.0
      %v1773 = vmin.f32 %v1741, 6.0
      %v1774 = vmin.f32 %v1742, 6.0
      %v1775 = vmin.f32 %v1743, 6.0
      %v1776 = vmin.f32 %v1744, 6.0
      %v1777 = vmin.f32 %v1745, 6.0
      %v1778 = vmin.f32 %v1746, 6.0
      %v1779 = vmin.f32 %v1747, 6.0
      %v1780 = vmin.f32 %v1748, 6.0
      %v1781 = vmin.f32 %v1749, 6.0
      %v1782 = vmin.f32 %v1750, 6.0
      %v1783 = vmin.f32 %v1751, 6.0
      %v1784 = vmin.f32 %v1752, 6.0
      %v1785 = vmin.f32 %v1753, 6.0
      %v1786 = vmin.f32 %v1754, 6.0
      %v1787 = vmin.f32 %v1755, 6.0
      %v1788 = vmin.f32 %v1756, 6.0
      %v1789 = vmin.f32 %v1757, 6.0
      %v1790 = vmin.f32 %v1758, 6.0
      %v1791 = vmin.f32 %v1759, 6.0
      %v1792 = vmin.f32 %v1760, 6.0
      %v1793 = vmin.f32 %v1761, 6.0
      %v1794 = vmin.f32 %v1762, 6.0
      %v1795 = vmin.f32 %v1763, 6.0
      %v1796 = vmin.f32 %v1764, 6.0
      %v1797 = vmin.f32 %v1765, 6.0
      %v1798 = vmin.f32 %v1766, 6.0
      %v1799 = vmin.f32 %v1767, 6.0
      %v1800 = vmin.f32 %v1768, 6.0
      %v1801 = vld [vmem:[%s5] sm:$0xff]
      %v1802 = vld [vmem:[%s5 + $0x8] sm:$0xff]
      %v1803 = vld [vmem:[%s5 + $0x10] sm:$0xff]
      %v1804 = vld [vmem:[%s5 + $0x18] sm:$0xff]
      %v1805 = vld [vmem:[%s5 + $0x20] sm:$0xff]
      %v1806 = vld [vmem:[%s5 + $0x28] sm:$0xff]
      %v1807 = vld [vmem:[%s6] sm:$0x1]
      %v1809 = vlaneseq
      %v1810 = vshrl.u32 %v1809, 7
      %v1811 = vsub.s32 0, %v1810
      %v1812 = vrot.slane %v1807, %v1811
      %v1815 = vsel %vm705, %v1769, 0
      %v1818 = vsel %vm705, %v1770, 0
      %v1821 = vsel %vm705, %v1771, 0
      %v1824 = vsel %vm705, %v1772, 0
      %v1827 = vsel %vm705, %v1773, 0
      %v1830 = vsel %vm705, %v1774, 0
      %v1833 = vsel %vm705, %v1775, 0
      %v1836 = vsel %vm705, %v1776, 0
      %v1839 = vsel %vm705, %v1777, 0
      %v1842 = vsel %vm705, %v1778, 0
      %v1845 = vsel %vm705, %v1779, 0
      %v1848 = vsel %vm705, %v1780, 0
      %v1851 = vsel %vm705, %v1781, 0
      %v1854 = vsel %vm705, %v1782, 0
      %v1857 = vsel %vm705, %v1783, 0
      %v1860 = vsel %vm705, %v1784, 0
      %v1863 = vsel %vm705, %v1785, 0
      %v1866 = vsel %vm705, %v1786, 0
      %v1869 = vsel %vm705, %v1787, 0
      %v1872 = vsel %vm705, %v1788, 0
      %v1875 = vsel %vm705, %v1789, 0
      %v1878 = vsel %vm705, %v1790, 0
      %v1881 = vsel %vm705, %v1791, 0
      %v1884 = vsel %vm705, %v1792, 0
      %v1887 = vsel %vm705, %v1793, 0
      %v1890 = vsel %vm705, %v1794, 0
      %v1893 = vsel %vm705, %v1795, 0
      %v1896 = vsel %vm705, %v1796, 0
      %v1899 = vsel %vm705, %v1797, 0
      %v1902 = vsel %vm705, %v1798, 0
      %v1905 = vsel %vm705, %v1799, 0
      %v1908 = vsel %vm705, %v1800, 0
      %1910 = vmatprep.subr.mxu0 0.0
      %1911 = vmatpush1.msra.mxu0 %v1801
      %1912 = vmatprep.subr.mxu0 0.0
      %1913 = vmatpush1.msra.mxu0 %v1802
      %1914 = vmatprep.subr.mxu0 0.0
      %1915 = vmatpush1.msra.mxu0 %v1803
      %1916 = vmatprep.subr.mxu0 0.0
      %1917 = vmatpush1.msra.mxu0 %v1804
      %1918 = vmatprep.subr.mxu0 0.0
      %1919 = vmatpush1.msra.mxu0 %v1805
      %1920 = vmatprep.subr.mxu0 0.0
      %1921 = vmatpush1.msra.mxu0 %v1806
      %1922 = vmatprep.subr.mxu0 0.0
      %1923 = vmatpush1.msra.mxu0 0.0
      %1924 = vmatprep.subr.mxu0 0.0
      %1925 = vmatpush1.msra.mxu0 0.0
      %1926 = vmatprep.subr.mxu0 0.0
      %1927 = vmatpush1.msra.mxu0 0.0
      %1928 = vmatprep.subr.mxu0 0.0
      %1929 = vmatpush1.msra.mxu0 0.0
      %1930 = vmatprep.subr.mxu0 0.0
      %1931 = vmatpush1.msra.mxu0 0.0
      %1932 = vmatprep.subr.mxu0 0.0
      %1933 = vmatpush1.msra.mxu0 0.0
      %1934 = vmatprep.subr.mxu0 0.0
      %1935 = vmatpush1.msra.mxu0 0.0
      %1936 = vmatprep.subr.mxu0 0.0
      %1937 = vmatpush1.msra.mxu0 0.0
      %1938 = vmatprep.subr.mxu0 0.0
      %1939 = vmatpush1.msra.mxu0 0.0
      %1940 = vmatprep.subr.mxu0 0.0
      %1941 = vmatpush1.msra.mxu0 0.0
      %1942 = vmatprep.subr.mxu0 0.0
      %1943 = vmatpush1.msra.mxu0 0.0
      %1944 = vmatprep.subr.mxu0 0.0
      %1945 = vmatpush1.msra.mxu0 0.0
      %1946 = vmatprep.subr.mxu0 0.0
      %1947 = vmatpush1.msra.mxu0 0.0
      %1948 = vmatprep.subr.mxu0 0.0
      %1949 = vmatpush1.msra.mxu0 0.0
      %1950 = vmatprep.subr.mxu0 0.0
      %1951 = vmatpush1.msra.mxu0 0.0
      %1952 = vmatprep.subr.mxu0 0.0
      %1953 = vmatpush1.msra.mxu0 0.0
      %1954 = vmatprep.subr.mxu0 0.0
      %1955 = vmatpush1.msra.mxu0 0.0
      %1956 = vmatprep.subr.mxu0 0.0
      %1957 = vmatpush1.msra.mxu0 0.0
      %1958 = vmatprep.subr.mxu0 0.0
      %1959 = vmatpush1.msra.mxu0 0.0
      %1960 = vmatprep.subr.mxu0 0.0
      %1961 = vmatpush1.msra.mxu0 0.0
      %1962 = vmatprep.subr.mxu0 0.0
      %1963 = vmatpush1.msra.mxu0 0.0
      %1964 = vmatprep.subr.mxu0 0.0
      %1965 = vmatpush1.msra.mxu0 0.0
      %1966 = vmatprep.subr.mxu0 0.0
      %1967 = vmatpush1.msra.mxu0 0.0
      %1968 = vmatprep.subr.mxu0 0.0
      %1969 = vmatpush1.msra.mxu0 0.0
      %1970 = vmatprep.subr.mxu0 0.0
      %1971 = vmatpush1.msra.mxu0 0.0
      %1972 = vmatprep.subr.mxu0 0.0
      %1973 = vmatpush1.msra.mxu0 0.0
      %1974 = vmatprep.mubr.f32.mxu0 0.0
      %1975 = vmatmul.mubr.f32.gmra.mrb[0].mxu0 %v1815
      %v1976 = vpop.f32.mrb[0].mxu0
      %v1977 = vadd.f32 %v1812, %v1976
      %v1978 = vpop.f32.mrb[0].mxu0
      %1979 = vmatprep.mubr.f32.mxu0 0.0
      %1980 = vmatmul.mubr.f32.gmra.mrb[0].mxu0 %v1818
      %v1981 = vpop.f32.mrb[0].mxu0
      %v1982 = vadd.f32 %v1812, %v1981
      %v1983 = vpop.f32.mrb[0].mxu0
      %1984 = vmatprep.mubr.f32.mxu0 0.0
      %1985 = vmatmul.mubr.f32.gmra.mrb[0].mxu0 %v1821
      %v1986 = vpop.f32.mrb[0].mxu0
      %v1987 = vadd.f32 %v1812, %v1986
      %v1988 = vpop.f32.mrb[0].mxu0
      %1989 = vmatprep.mubr.f32.mxu0 0.0
      %1990 = vmatmul.mubr.f32.gmra.mrb[0].mxu0 %v1824
      %v1991 = vpop.f32.mrb[0].mxu0
      %v1992 = vadd.f32 %v1812, %v1991
      %v1993 = vpop.f32.mrb[0].mxu0
      %1994 = vmatprep.mubr.f32.mxu0 0.0
      %1995 = vmatmul.mubr.f32.gmra.mrb[0].mxu0 %v1827
      %v1996 = vpop.f32.mrb[0].mxu0
      %v1997 = vadd.f32 %v1812, %v1996
      %v1998 = vpop.f32.mrb[0].mxu0
      %1999 = vmatprep.mubr.f32.mxu0 0.0
      %2000 = vmatmul.mubr.f32.gmra.mrb[0].mxu0 %v1830
      %v2001 = vpop.f32.mrb[0].mxu0
      %v2002 = vadd.f32 %v1812, %v2001
      %v2003 = vpop.f32.mrb[0].mxu0
      %2004 = vmatprep.mubr.f32.mxu0 0.0
      %2005 = vmatmul.mubr.f32.gmra.mrb[0].mxu0 %v1833
      %v2006 = vpop.f32.mrb[0].mxu0
      %v2007 = vadd.f32 %v1812, %v2006
      %v2008 = vpop.f32.mrb[0].mxu0
      %2009 = vmatprep.mubr.f32.mxu0 0.0
      %2010 = vmatmul.mubr.f32.gmra.mrb[0].mxu0 %v1836
      %v2011 = vpop.f32.mrb[0].mxu0
      %v2012 = vadd.f32 %v1812, %v2011
      %v2013 = vpop.f32.mrb[0].mxu0
      %2014 = vmatprep.mubr.f32.mxu0 0.0
      %2015 = vmatmul.mubr.f32.gmra.mrb[0].mxu0 %v1839
      %v2016 = vpop.f32.mrb[0].mxu0
      %v2017 = vadd.f32 %v1812, %v2016
      %v2018 = vpop.f32.mrb[0].mxu0
      %2019 = vmatprep.mubr.f32.mxu0 0.0
      %2020 = vmatmul.mubr.f32.gmra.mrb[0].mxu0 %v1842
      %v2021 = vpop.f32.mrb[0].mxu0
      %v2022 = vadd.f32 %v1812, %v2021
      %v2023 = vpop.f32.mrb[0].mxu0
      %2024 = vmatprep.mubr.f32.mxu0 0.0
      %2025 = vmatmul.mubr.f32.gmra.mrb[0].mxu0 %v1845
      %v2026 = vpop.f32.mrb[0].mxu0
      %v2027 = vadd.f32 %v1812, %v2026
      %v2028 = vpop.f32.mrb[0].mxu0
      %2029 = vmatprep.mubr.f32.mxu0 0.0
      %2030 = vmatmul.mubr.f32.gmra.mrb[0].mxu0 %v1848
      %v2031 = vpop.f32.mrb[0].mxu0
      %v2032 = vadd.f32 %v1812, %v2031
      %v2033 = vpop.f32.mrb[0].mxu0
      %2034 = vmatprep.mubr.f32.mxu0 0.0
      %2035 = vmatmul.mubr.f32.gmra.mrb[0].mxu0 %v1851
      %v2036 = vpop.f32.mrb[0].mxu0
      %v2037 = vadd.f32 %v1812, %v2036
      %v2038 = vpop.f32.mrb[0].mxu0
      %2039 = vmatprep.mubr.f32.mxu0 0.0
      %2040 = vmatmul.mubr.f32.gmra.mrb[0].mxu0 %v1854
      %v2041 = vpop.f32.mrb[0].mxu0
      %v2042 = vadd.f32 %v1812, %v2041
      %v2043 = vpop.f32.mrb[0].mxu0
      %2044 = vmatprep.mubr.f32.mxu0 0.0
      %2045 = vmatmul.mubr.f32.gmra.mrb[0].mxu0 %v1857
      %v2046 = vpop.f32.mrb[0].mxu0
      %v2047 = vadd.f32 %v1812, %v2046
      %v2048 = vpop.f32.mrb[0].mxu0
      %2049 = vmatprep.mubr.f32.mxu0 0.0
      %2050 = vmatmul.mubr.f32.gmra.mrb[0].mxu0 %v1860
      %v2051 = vpop.f32.mrb[0].mxu0
      %v2052 = vadd.f32 %v1812, %v2051
      %v2053 = vpop.f32.mrb[0].mxu0
      %2054 = vmatprep.mubr.f32.mxu0 0.0
      %2055 = vmatmul.mubr.f32.gmra.mrb[0].mxu0 %v1863
      %v2056 = vpop.f32.mrb[0].mxu0
      %v2057 = vadd.f32 %v1812, %v2056
      %v2058 = vpop.f32.mrb[0].mxu0
      %2059 = vmatprep.mubr.f32.mxu0 0.0
      %2060 = vmatmul.mubr.f32.gmra.mrb[0].mxu0 %v1866
      %v2061 = vpop.f32.mrb[0].mxu0
      %v2062 = vadd.f32 %v1812, %v2061
      %v2063 = vpop.f32.mrb[0].mxu0
      %2064 = vmatprep.mubr.f32.mxu0 0.0
      %2065 = vmatmul.mubr.f32.gmra.mrb[0].mxu0 %v1869
      %v2066 = vpop.f32.mrb[0].mxu0
      %v2067 = vadd.f32 %v1812, %v2066
      %v2068 = vpop.f32.mrb[0].mxu0
      %2069 = vmatprep.mubr.f32.mxu0 0.0
      %2070 = vmatmul.mubr.f32.gmra.mrb[0].mxu0 %v1872
      %v2071 = vpop.f32.mrb[0].mxu0
      %v2072 = vadd.f32 %v1812, %v2071
      %v2073 = vpop.f32.mrb[0].mxu0
      %2074 = vmatprep.mubr.f32.mxu0 0.0
      %2075 = vmatmul.mubr.f32.gmra.mrb[0].mxu0 %v1875
      %v2076 = vpop.f32.mrb[0].mxu0
      %v2077 = vadd.f32 %v1812, %v2076
      %v2078 = vpop.f32.mrb[0].mxu0
      %2079 = vmatprep.mubr.f32.mxu0 0.0
      %2080 = vmatmul.mubr.f32.gmra.mrb[0].mxu0 %v1878
      %v2081 = vpop.f32.mrb[0].mxu0
      %v2082 = vadd.f32 %v1812, %v2081
      %v2083 = vpop.f32.mrb[0].mxu0
      %2084 = vmatprep.mubr.f32.mxu0 0.0
      %2085 = vmatmul.mubr.f32.gmra.mrb[0].mxu0 %v1881
      %v2086 = vpop.f32.mrb[0].mxu0
      %v2087 = vadd.f32 %v1812, %v2086
      %v2088 = vpop.f32.mrb[0].mxu0
      %2089 = vmatprep.mubr.f32.mxu0 0.0
      %2090 = vmatmul.mubr.f32.gmra.mrb[0].mxu0 %v1884
      %v2091 = vpop.f32.mrb[0].mxu0
      %v2092 = vadd.f32 %v1812, %v2091
      %v2093 = vpop.f32.mrb[0].mxu0
      %2094 = vmatprep.mubr.f32.mxu0 0.0
      %2095 = vmatmul.mubr.f32.gmra.mrb[0].mxu0 %v1887
      %v2096 = vpop.f32.mrb[0].mxu0
      %v2097 = vadd.f32 %v1812, %v2096
      %v2098 = vpop.f32.mrb[0].mxu0
      %2099 = vmatprep.mubr.f32.mxu0 0.0
      %2100 = vmatmul.mubr.f32.gmra.mrb[0].mxu0 %v1890
      %v2101 = vpop.f32.mrb[0].mxu0
      %v2102 = vadd.f32 %v1812, %v2101
      %v2103 = vpop.f32.mrb[0].mxu0
      %2104 = vmatprep.mubr.f32.mxu0 0.0
      %2105 = vmatmul.mubr.f32.gmra.mrb[0].mxu0 %v1893
      %v2106 = vpop.f32.mrb[0].mxu0
      %v2107 = vadd.f32 %v1812, %v2106
      %v2108 = vpop.f32.mrb[0].mxu0
      %2109 = vmatprep.mubr.f32.mxu0 0.0
      %2110 = vmatmul.mubr.f32.gmra.mrb[0].mxu0 %v1896
      %v2111 = vpop.f32.mrb[0].mxu0
      %v2112 = vadd.f32 %v1812, %v2111
      %v2113 = vpop.f32.mrb[0].mxu0
      %2114 = vmatprep.mubr.f32.mxu0 0.0
      %2115 = vmatmul.mubr.f32.gmra.mrb[0].mxu0 %v1899
      %v2116 = vpop.f32.mrb[0].mxu0
      %v2117 = vadd.f32 %v1812, %v2116
      %v2118 = vpop.f32.mrb[0].mxu0
      %2119 = vmatprep.mubr.f32.mxu0 0.0
      %2120 = vmatmul.mubr.f32.gmra.mrb[0].mxu0 %v1902
      %v2121 = vpop.f32.mrb[0].mxu0
      %v2122 = vadd.f32 %v1812, %v2121
      %v2123 = vpop.f32.mrb[0].mxu0
      %2124 = vmatprep.mubr.f32.mxu0 0.0
      %2125 = vmatmul.mubr.f32.gmra.mrb[0].mxu0 %v1905
      %v2126 = vpop.f32.mrb[0].mxu0
      %v2127 = vadd.f32 %v1812, %v2126
      %v2128 = vpop.f32.mrb[0].mxu0
      %2129 = vmatprep.mubr.f32.mxu0 0.0
      %2130 = vmatmul.mubr.f32.gmra.mrb[0].mxu0 %v1908
      %v2131 = vpop.f32.mrb[0].mxu0
      %v2132 = vadd.f32 %v1812, %v2131
      %v2133 = vpop.f32.mrb[0].mxu0
      %2134 = vdwg.mxu0
      %v2135 = vadd.f32 %v1977, %v279
      %v2136 = vadd.f32 %v1982, %v280
      %v2137 = vadd.f32 %v1987, %v281
      %v2138 = vadd.f32 %v1992, %v282
      %v2139 = vadd.f32 %v1997, %v283
      %v2140 = vadd.f32 %v2002, %v284
      %v2141 = vadd.f32 %v2007, %v285
      %v2142 = vadd.f32 %v2012, %v286
      %v2143 = vadd.f32 %v2017, %v287
      %v2144 = vadd.f32 %v2022, %v288
      %v2145 = vadd.f32 %v2027, %v289
      %v2146 = vadd.f32 %v2032, %v290
      %v2147 = vadd.f32 %v2037, %v291
      %v2148 = vadd.f32 %v2042, %v292
      %v2149 = vadd.f32 %v2047, %v293
      %v2150 = vadd.f32 %v2052, %v294
      %v2151 = vadd.f32 %v2057, %v295
      %v2152 = vadd.f32 %v2062, %v296
      %v2153 = vadd.f32 %v2067, %v297
      %v2154 = vadd.f32 %v2072, %v298
      %v2155 = vadd.f32 %v2077, %v299
      %v2156 = vadd.f32 %v2082, %v300
      %v2157 = vadd.f32 %v2087, %v301
      %v2158 = vadd.f32 %v2092, %v302
      %v2159 = vadd.f32 %v2097, %v303
      %v2160 = vadd.f32 %v2102, %v304
      %v2161 = vadd.f32 %v2107, %v305
      %v2162 = vadd.f32 %v2112, %v306
      %v2163 = vadd.f32 %v2117, %v307
      %v2164 = vadd.f32 %v2122, %v308
      %v2165 = vadd.f32 %v2127, %v309
      %v2166 = vadd.f32 %v2132, %v310
      %2167 = vst.msk [vmem:[%s278] sm:$0xff] %vm319, %v2135
      %2168 = vst.msk [vmem:[%s278 + $0x8] sm:$0xff] %vm319, %v2136
      %2169 = vst.msk [vmem:[%s278 + $0x10] sm:$0xff] %vm319, %v2137
      %2170 = vst.msk [vmem:[%s278 + $0x18] sm:$0xff] %vm319, %v2138
      %2171 = vst.msk [vmem:[%s278 + $0x20] sm:$0xff] %vm319, %v2139
      %2172 = vst.msk [vmem:[%s278 + $0x28] sm:$0xff] %vm319, %v2140
      %2173 = vst.msk [vmem:[%s278 + $0x30] sm:$0xff] %vm319, %v2141
      %2174 = vst.msk [vmem:[%s278 + $0x38] sm:$0xff] %vm319, %v2142
      %2175 = vst.msk [vmem:[%s278 + $0x40] sm:$0xff] %vm319, %v2143
      %2176 = vst.msk [vmem:[%s278 + $0x48] sm:$0xff] %vm319, %v2144
      %2177 = vst.msk [vmem:[%s278 + $0x50] sm:$0xff] %vm319, %v2145
      %2178 = vst.msk [vmem:[%s278 + $0x58] sm:$0xff] %vm319, %v2146
      %2179 = vst.msk [vmem:[%s278 + $0x60] sm:$0xff] %vm319, %v2147
      %2180 = vst.msk [vmem:[%s278 + $0x68] sm:$0xff] %vm319, %v2148
      %2181 = vst.msk [vmem:[%s278 + $0x70] sm:$0xff] %vm319, %v2149
      %2182 = vst.msk [vmem:[%s278 + $0x78] sm:$0xff] %vm319, %v2150
      %2183 = vst.msk [vmem:[%s278 + $0x80] sm:$0xff] %vm319, %v2151
      %2184 = vst.msk [vmem:[%s278 + $0x88] sm:$0xff] %vm319, %v2152
      %2185 = vst.msk [vmem:[%s278 + $0x90] sm:$0xff] %vm319, %v2153
      %2186 = vst.msk [vmem:[%s278 + $0x98] sm:$0xff] %vm319, %v2154
      %2187 = vst.msk [vmem:[%s278 + $0xa0] sm:$0xff] %vm319, %v2155
      %2188 = vst.msk [vmem:[%s278 + $0xa8] sm:$0xff] %vm319, %v2156
      %2189 = vst.msk [vmem:[%s278 + $0xb0] sm:$0xff] %vm319, %v2157
      %2190 = vst.msk [vmem:[%s278 + $0xb8] sm:$0xff] %vm319, %v2158
      %2191 = vst.msk [vmem:[%s278 + $0xc0] sm:$0xff] %vm319, %v2159
      %2192 = vst.msk [vmem:[%s278 + $0xc8] sm:$0xff] %vm319, %v2160
      %2193 = vst.msk [vmem:[%s278 + $0xd0] sm:$0xff] %vm319, %v2161
      %2194 = vst.msk [vmem:[%s278 + $0xd8] sm:$0xff] %vm319, %v2162
      %2195 = vst.msk [vmem:[%s278 + $0xe0] sm:$0xff] %vm319, %v2163
      %2196 = vst.msk [vmem:[%s278 + $0xe8] sm:$0xff] %vm319, %v2164
      %2197 = vst.msk [vmem:[%s278 + $0xf0] sm:$0xff] %vm319, %v2165
      %2198 = vst.msk [vmem:[%s278 + $0xf8] sm:$0xff] %vm319, %v2166
      %p2199 = scmp.lt.s32.totalorder %s18, 1
      %s2200 = scalar_select %p2199, %s18, 1
      %s2201 = smul.addr %s2200, 32
      %s2202 = smul.addr %s2201, 8
      %s2203 = scalar_lea.vmem %s7, %s2202
      // Predicated region
      $region49: #{a_call__.1} parent=47 // pred_check
        %p2204 = pneg %p188
      $region50: #{a_call__.1} parent=47 // pred_check_branch
        %2206 = sbr.rel (%p2204) target = $region52
      $region51: #{a_call__.1} parent=47 // pred_region
        _
      $region52: #{a_call__.1} parent=47 // pred_fallthru
        _
    $region48: #{a_call__.1} parent=5 // pred_fallthru
      _
    %p2207 = scmp.le.s32.totalorder 2, %s13
    // Predicated region
    $region53: #{a_call__.1} parent=5 // pred_check
      %p2208 = pneg %p2207
    $region54: #{a_call__.1} parent=5 // pred_check_branch
      %2210 = sbr.rel (%p2208) target = $region56
    $region55: #{a_call__.1} parent=5 // pred_region
      %s2211 = ssub.s32 %s13, 2
      // Predicated region
      $region57: #{a_call__.1} parent=55 // pred_check
        %p2212 = pneg %p194
      $region58: #{a_call__.1} parent=55 // pred_check_branch
        %2214 = sbr.rel (%p2212) target = $region60
      $region59: #{a_call__.1} parent=55 // pred_region
        %p2215 = scmp.lt.s32.totalorder %s19, 1
        %s2216 = scalar_select %p2215, %s19, 1
        %s2217 = smul.addr %s2216, 32
        %s2218 = smul.addr %s2217, 8
        %s2219 = scalar_lea.vmem %s7, %s2218
      $region60: #{a_call__.1} parent=55 // pred_fallthru
        _
    $region56: #{a_call__.1} parent=5 // pred_fallthru
      _
  $region6: #{a_call__.1} parent=0 // loop_footer
    %s17 = sadd.s32 1, %s13
  $region7: #{a_call__.1} parent=0 // loop_footer_branch
    %12 = sbr.rel target = $region3
  $region8: #{a_call__.1} parent=0 // loop_exit
    _

</llo_original>
